<compile_context>
chip_gen: v5e
topology: v5e:2x2
jax: 0.10.0
libtpu: 0.0.40
codegen_flags: <defaults>
</compile_context>

<pallas_src>
import jax
import jax.numpy as jnp
from jax import lax
from jax.experimental import pallas as pl
from jax.experimental.pallas import tpu as pltpu

EPS = 1e-5


def _layer_norm(v, gamma, beta):
    # myLayerNorm: biased variance, eps added inside the sqrt.
    # E[v] and E[v^2] reduce concurrently (shorter XLU chain than
    # mean-then-centered-moment); rsqrt keeps the divide on the EUP slot.
    mean = jnp.mean(v, axis=-1, keepdims=True)
    msq = jnp.mean(v * v, axis=-1, keepdims=True)
    var = msq - mean * mean
    return beta + gamma * (v - mean) * lax.rsqrt(var + EPS)


def _make_kernel(T_valid, Tc, H, unroll, needs_mask):
    """Build the chunked LSTM kernel (closure over static shape params)."""

    def kernel(x_ref, h0_ref, c0_ref,
               wx_ref, bx_ref, wh_ref, bh_ref,
               gxg_ref, gxb_ref, ghg_ref, ghb_ref, cg_ref, cb_ref,
               h_seq_ref, c_fin_ref,
               h_scr, c_scr):
        chunk = pl.program_id(0)
        B = h0_ref.shape[0]

        @pl.when(chunk == 0)
        def _():
            h_scr[...] = h0_ref[...]
            c_scr[...] = c0_ref[...]

        # ---- loop-invariant loads / broadcasts, hoisted out of the loop ----
        wx = wx_ref[...]                  # (I, 4H)
        wh = wh_ref[...]                  # (H, 4H)
        bx = bx_ref[...]                  # (1, 4H)
        bh = bh_ref[...]                  # (1, 4H)
        gxg, gxb = gxg_ref[...], gxb_ref[...]
        ghg, ghb = ghg_ref[...], ghb_ref[...]
        cg, cb = cg_ref[...], cb_ref[...]
        lane = lax.broadcasted_iota(jnp.int32, (B, 4 * H), 1)
        is_sig = lane < 3 * H             # i/f/o gates -> sigmoid, last -> tanh
        t_base = chunk * Tc

        def step(t, carry):
            h, c = carry                  # register-resident f32 carry
            x = x_ref[t]                  # (B, I)

            # Two small MXU passes; h never leaves vregs.
            gx_pre = jnp.dot(x.astype(wx.dtype), wx,
                             preferred_element_type=jnp.float32) + bx
            gh_pre = jnp.dot(h.astype(wh.dtype), wh,
                             preferred_element_type=jnp.float32) + bh
            g = _layer_norm(gx_pre, gxg, gxb) + _layer_norm(gh_pre, ghg, ghb)

            # One full-width (B, 4H) tanh for all four gate nonlinearities:
            # sigmoid(x) = 0.5*tanh(0.5*x) + 0.5.
            th = jnp.tanh(jnp.where(is_sig, 0.5 * g, g))
            gates = jnp.where(is_sig, 0.5 * th + 0.5, th)

            ig = gates[:, 0 * H:1 * H]
            fg = gates[:, 1 * H:2 * H]
            og = gates[:, 2 * H:3 * H]
            inp = gates[:, 3 * H:4 * H]

            c_new = c * fg + inp * ig
            h_new = og * jnp.tanh(_layer_norm(c_new, cg, cb))

            if needs_mask:
                # Freeze the carry in the zero-padded tail of the last chunk.
                valid = (t_base + t) < T_valid
                h_new = jnp.where(valid, h_new, h)
                c_new = jnp.where(valid, c_new, c)

            h_seq_ref[t] = h_new.astype(h_seq_ref.dtype)
            return h_new, c_new

        h_fin, c_fin = lax.fori_loop(0, Tc, step,
                                     (h_scr[...], c_scr[...]),
                                     unroll=unroll)

        # Per-chunk (not per-step) VMEM round-trip for the cross-chunk carry.
        h_scr[...] = h_fin
        c_scr[...] = c_fin
        # Constant-index output block: stays resident, one HBM flush at the end.
        c_fin_ref[...] = c_fin.astype(c_fin_ref.dtype)

    return kernel


def layer_norm_lstm_scan(x_seq, h0, c0, params, *,
                         matmul_dtype=jnp.float32, time_chunk=128):
    """Run the LayerNorm-LSTM cell over a whole sequence.

    x_seq: (T, B, I); h0, c0: (B, H).
    Returns (h_seq of shape (T, B, H), c_final of shape (B, H)).
    matmul_dtype=jnp.bfloat16 uses MXU-native operands on v5e/v6e/v7x
    (accumulation and the h/c carry stay f32; expect ~1e-2 drift vs f32).
    """
    T, B, I = x_seq.shape
    H = h0.shape[1]
    wx, bx, wh, bh, gxg, gxb, ghg, ghb, cg, cb = params

    Tc = min(time_chunk, T)
    n_chunks = pl.cdiv(T, Tc)
    T_pad = n_chunks * Tc
    if T_pad != T:
        x_seq = jnp.concatenate(
            [x_seq, jnp.zeros((T_pad - T, B, I), x_seq.dtype)], axis=0)

    wx_m = wx.astype(matmul_dtype)
    wh_m = wh.astype(matmul_dtype)
    weights = (wx_m, bx, wh_m, bh, gxg, gxb, ghg, ghb, cg, cb)

    # Constant block index across the chunk grid axis -> resident in VMEM.
    def resident(a):
        return pl.BlockSpec(a.shape, lambda i, nd=a.ndim: (0,) * nd)

    unroll = bool(Tc <= 32)     # short fixed trip-count -> full LLO visibility
    kernel = _make_kernel(T, Tc, H, unroll, needs_mask=(T_pad != T))

    grid_spec = pltpu.PrefetchScalarGridSpec(
        num_scalar_prefetch=0,
        grid=(n_chunks,),
        in_specs=[pl.BlockSpec((Tc, B, I), lambda i: (i, 0, 0)),   # x per chunk
                  resident(h0), resident(c0)]
                 + [resident(a) for a in weights],
        out_specs=(pl.BlockSpec((Tc, B, H), lambda i: (i, 0, 0)),  # h per chunk
                   pl.BlockSpec((B, H), lambda i: (0, 0))),        # final c
        scratch_shapes=[pltpu.VMEM((B, H), jnp.float32),           # h carry
                        pltpu.VMEM((B, H), jnp.float32)],          # c carry
    )

    # VMEM budget from actual buffer sizes (double-buffered streamed blocks +
    # resident params) with generous slack; trivially fits v7x's 64 MiB/core.
    bytes_needed = (2 * Tc * B * I * 4 + 2 * Tc * B * H * 4 + 4 * B * H * 4
                    + sum(2 * int(a.size) * a.dtype.itemsize for a in weights)
                    + 16 * 8 * 128 * 4)
    vmem_limit = int(max(4 * bytes_needed, 8 << 20))

    h_seq, c_fin = pl.pallas_call(
        kernel,
        out_shape=(jax.ShapeDtypeStruct((T_pad, B, H), jnp.float32),
                   jax.ShapeDtypeStruct((B, H), jnp.float32)),
        grid_spec=grid_spec,
        compiler_params=pltpu.CompilerParams(
            # Chunk axis is a sequential carry -> "arbitrary".
            dimension_semantics=("arbitrary",),
            vmem_limit_bytes=vmem_limit,
        ),
    )(x_seq, h0, c0, *weights)
    return h_seq[:T], c_fin


def layer_norm_lstm_cell(x, h, c, params):
    """Single-step interface matching myLayerNormLSTMCell.forward(x, h, c)."""
    h_seq, c_new = layer_norm_lstm_scan(x[None], h, c, params)
    h_new = h_seq[0]
    return h_new, (h_new, c_new)


# ----------------------- pure-JAX reference ---------------------------------
def _ln_ref(v, gamma, beta):
    mean = jnp.mean(v, axis=1, keepdims=True)
    var = jnp.mean((v - mean) ** 2, axis=1, keepdims=True)
    return beta + gamma * (v - mean) / jnp.sqrt(EPS + var)


def reference_cell(x, h, c, params):
    wx, bx, wh, bh, gxg, gxb, ghg, ghb, cg, cb = params
    H = h.shape[1]
    gx = _ln_ref(x @ wx + bx, gxg, gxb)
    gh = _ln_ref(h @ wh + bh, ghg, ghb)
    g = gx + gh
    ig = jax.nn.sigmoid(g[:, 0 * H:1 * H])
    fg = jax.nn.sigmoid(g[:, 1 * H:2 * H])
    og = jax.nn.sigmoid(g[:, 2 * H:3 * H])
    inp = jnp.tanh(g[:, 3 * H:4 * H])
    c_new = c * fg + inp * ig
    h_new = og * jnp.tanh(_ln_ref(c_new, cg, cb))
    return h_new, c_new


def reference_scan(x_seq, h0, c0, params):
    def step(carry, x):
        h, c = carry
        h_new, c_new = reference_cell(x, h, c, params)
        return (h_new, c_new), h_new
    (_, c_f), h_seq = jax.lax.scan(step, (h0, c0), x_seq)
    return h_seq, c_f


def init_params(key, inp_size, hidden_size):
    k1, k2, k3, k4 = jax.random.split(key, 4)
    bound_x = 1.0 / jnp.sqrt(inp_size)
    bound_h = 1.0 / jnp.sqrt(hidden_size)
    wx = jax.random.uniform(k1, (inp_size, 4 * hidden_size),
                            minval=-bound_x, maxval=bound_x, dtype=jnp.float32)
    bx = jax.random.uniform(k2, (1, 4 * hidden_size),
                            minval=-bound_x, maxval=bound_x, dtype=jnp.float32)
    wh = jax.random.uniform(k3, (hidden_size, 4 * hidden_size),
                            minval=-bound_h, maxval=bound_h, dtype=jnp.float32)
    bh = jax.random.uniform(k4, (1, 4 * hidden_size),
                            minval=-bound_h, maxval=bound_h, dtype=jnp.float32)
    gxg = jnp.ones((1, 4 * hidden_size), jnp.float32)
    gxb = jnp.zeros((1, 4 * hidden_size), jnp.float32)
    ghg = jnp.ones((1, 4 * hidden_size), jnp.float32)
    ghb = jnp.zeros((1, 4 * hidden_size), jnp.float32)
    cg = jnp.ones((1, hidden_size), jnp.float32)
    cb = jnp.zeros((1, hidden_size), jnp.float32)
    return (wx, bx, wh, bh, gxg, gxb, ghg, ghb, cg, cb)


if __name__ == "__main__":
    B, I, H, T = 8, 32, 32, 6   # 4H = 128 -> lane-aligned gate slab

    key = jax.random.PRNGKey(0)
    kx, kh, kc, kp = jax.random.split(key, 4)
    x_seq = jax.random.normal(kx, (T, B, I), dtype=jnp.float32)
    h0 = jax.random.normal(kh, (B, H), dtype=jnp.float32)
    c0 = jax.random.normal(kc, (B, H), dtype=jnp.float32)
    params = init_params(kp, I, H)

    # Fused-sequence kernel: all T cell steps in one grid step (T <= chunk).
    h_seq, c_fin = layer_norm_lstm_scan(x_seq, h0, c0, params)
    jax.block_until_ready((h_seq, c_fin))

    h_seq_ref, c_fin_ref = reference_scan(x_seq, h0, c0, params)
    # f32 path: rsqrt + tanh-identity sigmoid + two-moment LN differ ~1e-6.
    assert jnp.allclose(h_seq, h_seq_ref, atol=1e-4, rtol=1e-4)
    assert jnp.allclose(c_fin, c_fin_ref, atol=1e-4, rtol=1e-4)

    # Single-step interface identical to myLayerNormLSTMCell.forward.
    h1, (h1_again, c1) = layer_norm_lstm_cell(x_seq[0], h0, c0, params)
    jax.block_until_ready((h1, c1))
    h1_ref, c1_ref = reference_cell(x_seq[0], h0, c0, params)
    assert jnp.allclose(h1, h1_ref, atol=1e-4, rtol=1e-4)
    assert jnp.allclose(c1, c1_ref, atol=1e-4, rtol=1e-4)

    # bf16 MXU-operand path (MXU-native on v5e/v6e/v7x): f32 carry/accumulate,
    # so drift stays small; loose tolerance vs the f32 reference.
    h_seq_bf, c_fin_bf = layer_norm_lstm_scan(
        x_seq, h0, c0, params, matmul_dtype=jnp.bfloat16)
    jax.block_until_ready((h_seq_bf, c_fin_bf))
    assert jnp.allclose(h_seq_bf, h_seq_ref, atol=1e-1, rtol=1e-1)
    assert jnp.allclose(c_fin_bf, c_fin_ref, atol=1e-1, rtol=1e-1)

    print("KERNEL_OK")
</pallas_src>

<mosaic_0001>
module attributes {stable_mosaic.version = 11 : i64} {
  func.func @kernel(%arg0: i32, %arg1: memref<6x8x32xf32, #tpu.memory_space<vmem>>, %arg2: memref<8x32xf32, #tpu.memory_space<vmem>>, %arg3: memref<8x32xf32, #tpu.memory_space<vmem>>, %arg4: memref<32x128xf32, #tpu.memory_space<vmem>>, %arg5: memref<1x128xf32, #tpu.memory_space<vmem>>, %arg6: memref<32x128xf32, #tpu.memory_space<vmem>>, %arg7: memref<1x128xf32, #tpu.memory_space<vmem>>, %arg8: memref<1x128xf32, #tpu.memory_space<vmem>>, %arg9: memref<1x128xf32, #tpu.memory_space<vmem>>, %arg10: memref<1x128xf32, #tpu.memory_space<vmem>>, %arg11: memref<1x128xf32, #tpu.memory_space<vmem>>, %arg12: memref<1x32xf32, #tpu.memory_space<vmem>>, %arg13: memref<1x32xf32, #tpu.memory_space<vmem>>, %arg14: memref<6x8x32xf32, #tpu.memory_space<vmem>>, %arg15: memref<8x32xf32, #tpu.memory_space<vmem>>, %arg16: memref<8x32xf32, #tpu.memory_space<vmem>>, %arg17: memref<8x32xf32, #tpu.memory_space<vmem>>) attributes {dimension_semantics = [#tpu.dimension_semantics<arbitrary>], iteration_bounds = array<i64: 1>, scalar_prefetch = 0 : i64, scratch_operands = 2 : i64, tpu.core_type = #tpu.core_type<tc>, window_params = [{transform_indices = @transform_0, window_bounds = array<i64: 6, 8, 32>}, {pipeline_mode = #tpu.pipeline_mode<synchronous>, transform_indices = @transform_1, window_bounds = array<i64: 8, 32>}, {pipeline_mode = #tpu.pipeline_mode<synchronous>, transform_indices = @transform_2, window_bounds = array<i64: 8, 32>}, {pipeline_mode = #tpu.pipeline_mode<synchronous>, transform_indices = @transform_3, window_bounds = array<i64: 32, 128>}, {pipeline_mode = #tpu.pipeline_mode<synchronous>, transform_indices = @transform_4, window_bounds = array<i64: 1, 128>}, {pipeline_mode = #tpu.pipeline_mode<synchronous>, transform_indices = @transform_5, window_bounds = array<i64: 32, 128>}, {pipeline_mode = #tpu.pipeline_mode<synchronous>, transform_indices = @transform_6, window_bounds = array<i64: 1, 128>}, {pipeline_mode = #tpu.pipeline_mode<synchronous>, transform_indices = @transform_7, window_bounds = array<i64: 1, 128>}, {pipeline_mode = #tpu.pipeline_mode<synchronous>, transform_indices = @transform_8, window_bounds = array<i64: 1, 128>}, {pipeline_mode = #tpu.pipeline_mode<synchronous>, transform_indices = @transform_9, window_bounds = array<i64: 1, 128>}, {pipeline_mode = #tpu.pipeline_mode<synchronous>, transform_indices = @transform_10, window_bounds = array<i64: 1, 128>}, {pipeline_mode = #tpu.pipeline_mode<synchronous>, transform_indices = @transform_11, window_bounds = array<i64: 1, 32>}, {pipeline_mode = #tpu.pipeline_mode<synchronous>, transform_indices = @transform_12, window_bounds = array<i64: 1, 32>}, {transform_indices = @transform_13, window_bounds = array<i64: 6, 8, 32>}, {pipeline_mode = #tpu.pipeline_mode<synchronous>, transform_indices = @transform_14, window_bounds = array<i64: 8, 32>}]} {
    %c0_i32 = arith.constant 0 : i32
    %0 = arith.cmpi eq, %arg0, %c0_i32 : i32
    %1 = arith.extui %0 : i1 to i32
    %c0_i32_0 = arith.constant 0 : i32
    %2 = arith.cmpi ne, %1, %c0_i32_0 : i32
    scf.if %2 {
      %c0_174 = arith.constant 0 : index
      %c0_175 = arith.constant 0 : index
      %609 = vector.load %arg2[%c0_174, %c0_175] : memref<8x32xf32, #tpu.memory_space<vmem>>, vector<8x32xf32>
      %c0_176 = arith.constant 0 : index
      %c0_177 = arith.constant 0 : index
      %610 = vector.load %arg16[%c0_176, %c0_177] : memref<8x32xf32, #tpu.memory_space<vmem>>, vector<8x32xf32>
      tpu.vector_store %arg16[%c0_176, %c0_177], %609 {strides = array<i32>} : memref<8x32xf32, #tpu.memory_space<vmem>>, vector<8x32xf32>,
      %c0_178 = arith.constant 0 : index
      %c0_179 = arith.constant 0 : index
      %611 = vector.load %arg3[%c0_178, %c0_179] : memref<8x32xf32, #tpu.memory_space<vmem>>, vector<8x32xf32>
      %c0_180 = arith.constant 0 : index
      %c0_181 = arith.constant 0 : index
      %612 = vector.load %arg17[%c0_180, %c0_181] : memref<8x32xf32, #tpu.memory_space<vmem>>, vector<8x32xf32>
      tpu.vector_store %arg17[%c0_180, %c0_181], %611 {strides = array<i32>} : memref<8x32xf32, #tpu.memory_space<vmem>>, vector<8x32xf32>,
    } else {
    }
    %c0 = arith.constant 0 : index
    %c0_1 = arith.constant 0 : index
    %3 = vector.load %arg4[%c0, %c0_1] : memref<32x128xf32, #tpu.memory_space<vmem>>, vector<32x128xf32>
    %c0_2 = arith.constant 0 : index
    %c0_3 = arith.constant 0 : index
    %4 = vector.load %arg6[%c0_2, %c0_3] : memref<32x128xf32, #tpu.memory_space<vmem>>, vector<32x128xf32>
    %c0_4 = arith.constant 0 : index
    %c0_5 = arith.constant 0 : index
    %5 = vector.load %arg5[%c0_4, %c0_5] : memref<1x128xf32, #tpu.memory_space<vmem>>, vector<1x128xf32>
    %c0_6 = arith.constant 0 : index
    %c0_7 = arith.constant 0 : index
    %6 = vector.load %arg7[%c0_6, %c0_7] : memref<1x128xf32, #tpu.memory_space<vmem>>, vector<1x128xf32>
    %c0_8 = arith.constant 0 : index
    %c0_9 = arith.constant 0 : index
    %7 = vector.load %arg8[%c0_8, %c0_9] : memref<1x128xf32, #tpu.memory_space<vmem>>, vector<1x128xf32>
    %c0_10 = arith.constant 0 : index
    %c0_11 = arith.constant 0 : index
    %8 = vector.load %arg9[%c0_10, %c0_11] : memref<1x128xf32, #tpu.memory_space<vmem>>, vector<1x128xf32>
    %c0_12 = arith.constant 0 : index
    %c0_13 = arith.constant 0 : index
    %9 = vector.load %arg10[%c0_12, %c0_13] : memref<1x128xf32, #tpu.memory_space<vmem>>, vector<1x128xf32>
    %c0_14 = arith.constant 0 : index
    %c0_15 = arith.constant 0 : index
    %10 = vector.load %arg11[%c0_14, %c0_15] : memref<1x128xf32, #tpu.memory_space<vmem>>, vector<1x128xf32>
    %c0_16 = arith.constant 0 : index
    %c0_17 = arith.constant 0 : index
    %11 = vector.load %arg12[%c0_16, %c0_17] : memref<1x32xf32, #tpu.memory_space<vmem>>, vector<1x32xf32>
    %c0_18 = arith.constant 0 : index
    %c0_19 = arith.constant 0 : index
    %12 = vector.load %arg13[%c0_18, %c0_19] : memref<1x32xf32, #tpu.memory_space<vmem>>, vector<1x32xf32>
    %13 = tpu.iota {dimensions = array<i32: 1>} : vector<8x128xi32>
    %c96_i32 = arith.constant 96 : i32
    %14 = vector.broadcast %c96_i32 : i32 to vector<8x128xi32>
    %15 = arith.cmpi slt, %13, %14 : vector<8x128xi32>
    %c0_20 = arith.constant 0 : index
    %c0_21 = arith.constant 0 : index
    %16 = vector.load %arg16[%c0_20, %c0_21] : memref<8x32xf32, #tpu.memory_space<vmem>>, vector<8x32xf32>
    %c0_22 = arith.constant 0 : index
    %c0_23 = arith.constant 0 : index
    %17 = vector.load %arg17[%c0_22, %c0_23] : memref<8x32xf32, #tpu.memory_space<vmem>>, vector<8x32xf32>
    %c0_i32_24 = arith.constant 0 : i32
    %18 = arith.index_cast %c0_i32_24 : i32 to index
    %c0_25 = arith.constant 0 : index
    %c0_26 = arith.constant 0 : index
    %19 = vector.load %arg1[%18, %c0_25, %c0_26] : memref<6x8x32xf32, #tpu.memory_space<vmem>>, vector<1x8x32xf32>
    %20 = vector.shape_cast %19 : vector<1x8x32xf32> to vector<8x32xf32>
    %cst = arith.constant dense<0.000000e+00> : vector<8x128xf32>
    %21 = tpu.matmul %20, %3, %cst {dimension_numbers = #tpu.dot_dimension_numbers<[1], [0], [0], [1], [0, 0, 1, 1], [], []>} : vector<8x32xf32>, vector<32x128xf32>, vector<8x128xf32> -> vector<8x128xf32>
    %22 = vector.broadcast %5 : vector<1x128xf32> to vector<8x128xf32>
    %23 = arith.addf %21, %22 : vector<8x128xf32>
    %cst_27 = arith.constant dense<0.000000e+00> : vector<8x128xf32>
    %24 = tpu.matmul %16, %4, %cst_27 {dimension_numbers = #tpu.dot_dimension_numbers<[1], [0], [0], [1], [0, 0, 1, 1], [], []>} : vector<8x32xf32>, vector<32x128xf32>, vector<8x128xf32> -> vector<8x128xf32>
    %25 = vector.broadcast %6 : vector<1x128xf32> to vector<8x128xf32>
    %26 = arith.addf %24, %25 : vector<8x128xf32>
    %cst_28 = arith.constant dense<0.000000e+00> : vector<8xf32>
    %27 = vector.multi_reduction <add>, %23, %cst_28 [1] : vector<8x128xf32> to vector<8xf32>
    %28 = vector.shape_cast %27 : vector<8xf32> to vector<8x1xf32>
    %cst_29 = arith.constant 1.280000e+02 : f32
    %29 = vector.broadcast %cst_29 : f32 to vector<8x1xf32>
    %30 = arith.divf %28, %29 : vector<8x1xf32>
    %31 = arith.mulf %23, %23 : vector<8x128xf32>
    %cst_30 = arith.constant dense<0.000000e+00> : vector<8xf32>
    %32 = vector.multi_reduction <add>, %31, %cst_30 [1] : vector<8x128xf32> to vector<8xf32>
    %33 = vector.shape_cast %32 : vector<8xf32> to vector<8x1xf32>
    %cst_31 = arith.constant 1.280000e+02 : f32
    %34 = vector.broadcast %cst_31 : f32 to vector<8x1xf32>
    %35 = arith.divf %33, %34 : vector<8x1xf32>
    %36 = arith.mulf %30, %30 : vector<8x1xf32>
    %37 = arith.subf %35, %36 : vector<8x1xf32>
    %38 = vector.broadcast %30 : vector<8x1xf32> to vector<8x128xf32>
    %39 = arith.subf %23, %38 : vector<8x128xf32>
    %40 = vector.broadcast %7 : vector<1x128xf32> to vector<8x128xf32>
    %41 = arith.mulf %40, %39 : vector<8x128xf32>
    %cst_32 = arith.constant 9.99999974E-6 : f32
    %42 = vector.broadcast %cst_32 : f32 to vector<8x1xf32>
    %43 = arith.addf %37, %42 : vector<8x1xf32>
    %44 = math.rsqrt %43 : vector<8x1xf32>
    %45 = vector.broadcast %44 : vector<8x1xf32> to vector<8x128xf32>
    %46 = arith.mulf %41, %45 : vector<8x128xf32>
    %47 = vector.broadcast %8 : vector<1x128xf32> to vector<8x128xf32>
    %48 = arith.addf %47, %46 : vector<8x128xf32>
    %cst_33 = arith.constant dense<0.000000e+00> : vector<8xf32>
    %49 = vector.multi_reduction <add>, %26, %cst_33 [1] : vector<8x128xf32> to vector<8xf32>
    %50 = vector.shape_cast %49 : vector<8xf32> to vector<8x1xf32>
    %cst_34 = arith.constant 1.280000e+02 : f32
    %51 = vector.broadcast %cst_34 : f32 to vector<8x1xf32>
    %52 = arith.divf %50, %51 : vector<8x1xf32>
    %53 = arith.mulf %26, %26 : vector<8x128xf32>
    %cst_35 = arith.constant dense<0.000000e+00> : vector<8xf32>
    %54 = vector.multi_reduction <add>, %53, %cst_35 [1] : vector<8x128xf32> to vector<8xf32>
    %55 = vector.shape_cast %54 : vector<8xf32> to vector<8x1xf32>
    %cst_36 = arith.constant 1.280000e+02 : f32
    %56 = vector.broadcast %cst_36 : f32 to vector<8x1xf32>
    %57 = arith.divf %55, %56 : vector<8x1xf32>
    %58 = arith.mulf %52, %52 : vector<8x1xf32>
    %59 = arith.subf %57, %58 : vector<8x1xf32>
    %60 = vector.broadcast %52 : vector<8x1xf32> to vector<8x128xf32>
    %61 = arith.subf %26, %60 : vector<8x128xf32>
    %62 = vector.broadcast %9 : vector<1x128xf32> to vector<8x128xf32>
    %63 = arith.mulf %62, %61 : vector<8x128xf32>
    %cst_37 = arith.constant 9.99999974E-6 : f32
    %64 = vector.broadcast %cst_37 : f32 to vector<8x1xf32>
    %65 = arith.addf %59, %64 : vector<8x1xf32>
    %66 = math.rsqrt %65 : vector<8x1xf32>
    %67 = vector.broadcast %66 : vector<8x1xf32> to vector<8x128xf32>
    %68 = arith.mulf %63, %67 : vector<8x128xf32>
    %69 = vector.broadcast %10 : vector<1x128xf32> to vector<8x128xf32>
    %70 = arith.addf %69, %68 : vector<8x128xf32>
    %71 = arith.addf %48, %70 : vector<8x128xf32>
    %cst_38 = arith.constant 5.000000e-01 : f32
    %72 = vector.broadcast %cst_38 : f32 to vector<8x128xf32>
    %73 = arith.mulf %72, %71 : vector<8x128xf32>
    %74 = arith.select %15, %73, %71 : vector<8x128xi1>, vector<8x128xf32>
    %75 = math.tanh %74 : vector<8x128xf32>
    %cst_39 = arith.constant 5.000000e-01 : f32
    %76 = vector.broadcast %cst_39 : f32 to vector<8x128xf32>
    %77 = arith.mulf %76, %75 : vector<8x128xf32>
    %cst_40 = arith.constant 5.000000e-01 : f32
    %78 = vector.broadcast %cst_40 : f32 to vector<8x128xf32>
    %79 = arith.addf %77, %78 : vector<8x128xf32>
    %80 = arith.select %15, %79, %75 : vector<8x128xi1>, vector<8x128xf32>
    %81 = vector.extract_strided_slice %80 {offsets = [0, 0], sizes = [8, 32], strides = [1, 1]} : vector<8x128xf32> to vector<8x32xf32>
    %82 = vector.extract_strided_slice %80 {offsets = [0, 32], sizes = [8, 32], strides = [1, 1]} : vector<8x128xf32> to vector<8x32xf32>
    %83 = vector.extract_strided_slice %80 {offsets = [0, 64], sizes = [8, 32], strides = [1, 1]} : vector<8x128xf32> to vector<8x32xf32>
    %84 = vector.extract_strided_slice %80 {offsets = [0, 96], sizes = [8, 32], strides = [1, 1]} : vector<8x128xf32> to vector<8x32xf32>
    %85 = arith.mulf %17, %82 : vector<8x32xf32>
    %86 = arith.mulf %84, %81 : vector<8x32xf32>
    %87 = arith.addf %85, %86 : vector<8x32xf32>
    %cst_41 = arith.constant dense<0.000000e+00> : vector<8xf32>
    %88 = vector.multi_reduction <add>, %87, %cst_41 [1] : vector<8x32xf32> to vector<8xf32>
    %89 = vector.shape_cast %88 : vector<8xf32> to vector<8x1xf32>
    %cst_42 = arith.constant 3.200000e+01 : f32
    %90 = vector.broadcast %cst_42 : f32 to vector<8x1xf32>
    %91 = arith.divf %89, %90 : vector<8x1xf32>
    %92 = arith.mulf %87, %87 : vector<8x32xf32>
    %cst_43 = arith.constant dense<0.000000e+00> : vector<8xf32>
    %93 = vector.multi_reduction <add>, %92, %cst_43 [1] : vector<8x32xf32> to vector<8xf32>
    %94 = vector.shape_cast %93 : vector<8xf32> to vector<8x1xf32>
    %cst_44 = arith.constant 3.200000e+01 : f32
    %95 = vector.broadcast %cst_44 : f32 to vector<8x1xf32>
    %96 = arith.divf %94, %95 : vector<8x1xf32>
    %97 = arith.mulf %91, %91 : vector<8x1xf32>
    %98 = arith.subf %96, %97 : vector<8x1xf32>
    %99 = vector.broadcast %91 : vector<8x1xf32> to vector<8x32xf32>
    %100 = arith.subf %87, %99 : vector<8x32xf32>
    %101 = vector.broadcast %11 : vector<1x32xf32> to vector<8x32xf32>
    %102 = arith.mulf %101, %100 : vector<8x32xf32>
    %cst_45 = arith.constant 9.99999974E-6 : f32
    %103 = vector.broadcast %cst_45 : f32 to vector<8x1xf32>
    %104 = arith.addf %98, %103 : vector<8x1xf32>
    %105 = math.rsqrt %104 : vector<8x1xf32>
    %106 = vector.broadcast %105 : vector<8x1xf32> to vector<8x32xf32>
    %107 = arith.mulf %102, %106 : vector<8x32xf32>
    %108 = vector.broadcast %12 : vector<1x32xf32> to vector<8x32xf32>
    %109 = arith.addf %108, %107 : vector<8x32xf32>
    %110 = math.tanh %109 : vector<8x32xf32>
    %111 = arith.mulf %83, %110 : vector<8x32xf32>
    %112 = arith.index_cast %c0_i32_24 : i32 to index
    %c0_46 = arith.constant 0 : index
    %c0_47 = arith.constant 0 : index
    %113 = vector.load %arg14[%112, %c0_46, %c0_47] : memref<6x8x32xf32, #tpu.memory_space<vmem>>, vector<1x8x32xf32>
    %114 = vector.shape_cast %113 : vector<1x8x32xf32> to vector<8x32xf32>
    %115 = vector.shape_cast %111 : vector<8x32xf32> to vector<1x8x32xf32>
    tpu.vector_store %arg14[%112, %c0_46, %c0_47], %115 {strides = array<i32>} : memref<6x8x32xf32, #tpu.memory_space<vmem>>, vector<1x8x32xf32>,
    %c1_i32 = arith.constant 1 : i32
    %116 = arith.index_cast %c1_i32 : i32 to index
    %c0_48 = arith.constant 0 : index
    %c0_49 = arith.constant 0 : index
    %117 = vector.load %arg1[%116, %c0_48, %c0_49] : memref<6x8x32xf32, #tpu.memory_space<vmem>>, vector<1x8x32xf32>
    %118 = vector.shape_cast %117 : vector<1x8x32xf32> to vector<8x32xf32>
    %cst_50 = arith.constant dense<0.000000e+00> : vector<8x128xf32>
    %119 = tpu.matmul %118, %3, %cst_50 {dimension_numbers = #tpu.dot_dimension_numbers<[1], [0], [0], [1], [0, 0, 1, 1], [], []>} : vector<8x32xf32>, vector<32x128xf32>, vector<8x128xf32> -> vector<8x128xf32>
    %120 = vector.broadcast %5 : vector<1x128xf32> to vector<8x128xf32>
    %121 = arith.addf %119, %120 : vector<8x128xf32>
    %cst_51 = arith.constant dense<0.000000e+00> : vector<8x128xf32>
    %122 = tpu.matmul %111, %4, %cst_51 {dimension_numbers = #tpu.dot_dimension_numbers<[1], [0], [0], [1], [0, 0, 1, 1], [], []>} : vector<8x32xf32>, vector<32x128xf32>, vector<8x128xf32> -> vector<8x128xf32>
    %123 = vector.broadcast %6 : vector<1x128xf32> to vector<8x128xf32>
    %124 = arith.addf %122, %123 : vector<8x128xf32>
    %cst_52 = arith.constant dense<0.000000e+00> : vector<8xf32>
    %125 = vector.multi_reduction <add>, %121, %cst_52 [1] : vector<8x128xf32> to vector<8xf32>
    %126 = vector.shape_cast %125 : vector<8xf32> to vector<8x1xf32>
    %cst_53 = arith.constant 1.280000e+02 : f32
    %127 = vector.broadcast %cst_53 : f32 to vector<8x1xf32>
    %128 = arith.divf %126, %127 : vector<8x1xf32>
    %129 = arith.mulf %121, %121 : vector<8x128xf32>
    %cst_54 = arith.constant dense<0.000000e+00> : vector<8xf32>
    %130 = vector.multi_reduction <add>, %129, %cst_54 [1] : vector<8x128xf32> to vector<8xf32>
    %131 = vector.shape_cast %130 : vector<8xf32> to vector<8x1xf32>
    %cst_55 = arith.constant 1.280000e+02 : f32
    %132 = vector.broadcast %cst_55 : f32 to vector<8x1xf32>
    %133 = arith.divf %131, %132 : vector<8x1xf32>
    %134 = arith.mulf %128, %128 : vector<8x1xf32>
    %135 = arith.subf %133, %134 : vector<8x1xf32>
    %136 = vector.broadcast %128 : vector<8x1xf32> to vector<8x128xf32>
    %137 = arith.subf %121, %136 : vector<8x128xf32>
    %138 = vector.broadcast %7 : vector<1x128xf32> to vector<8x128xf32>
    %139 = arith.mulf %138, %137 : vector<8x128xf32>
    %cst_56 = arith.constant 9.99999974E-6 : f32
    %140 = vector.broadcast %cst_56 : f32 to vector<8x1xf32>
    %141 = arith.addf %135, %140 : vector<8x1xf32>
    %142 = math.rsqrt %141 : vector<8x1xf32>
    %143 = vector.broadcast %142 : vector<8x1xf32> to vector<8x128xf32>
    %144 = arith.mulf %139, %143 : vector<8x128xf32>
    %145 = vector.broadcast %8 : vector<1x128xf32> to vector<8x128xf32>
    %146 = arith.addf %145, %144 : vector<8x128xf32>
    %cst_57 = arith.constant dense<0.000000e+00> : vector<8xf32>
    %147 = vector.multi_reduction <add>, %124, %cst_57 [1] : vector<8x128xf32> to vector<8xf32>
    %148 = vector.shape_cast %147 : vector<8xf32> to vector<8x1xf32>
    %cst_58 = arith.constant 1.280000e+02 : f32
    %149 = vector.broadcast %cst_58 : f32 to vector<8x1xf32>
    %150 = arith.divf %148, %149 : vector<8x1xf32>
    %151 = arith.mulf %124, %124 : vector<8x128xf32>
    %cst_59 = arith.constant dense<0.000000e+00> : vector<8xf32>
    %152 = vector.multi_reduction <add>, %151, %cst_59 [1] : vector<8x128xf32> to vector<8xf32>
    %153 = vector.shape_cast %152 : vector<8xf32> to vector<8x1xf32>
    %cst_60 = arith.constant 1.280000e+02 : f32
    %154 = vector.broadcast %cst_60 : f32 to vector<8x1xf32>
    %155 = arith.divf %153, %154 : vector<8x1xf32>
    %156 = arith.mulf %150, %150 : vector<8x1xf32>
    %157 = arith.subf %155, %156 : vector<8x1xf32>
    %158 = vector.broadcast %150 : vector<8x1xf32> to vector<8x128xf32>
    %159 = arith.subf %124, %158 : vector<8x128xf32>
    %160 = vector.broadcast %9 : vector<1x128xf32> to vector<8x128xf32>
    %161 = arith.mulf %160, %159 : vector<8x128xf32>
    %cst_61 = arith.constant 9.99999974E-6 : f32
    %162 = vector.broadcast %cst_61 : f32 to vector<8x1xf32>
    %163 = arith.addf %157, %162 : vector<8x1xf32>
    %164 = math.rsqrt %163 : vector<8x1xf32>
    %165 = vector.broadcast %164 : vector<8x1xf32> to vector<8x128xf32>
    %166 = arith.mulf %161, %165 : vector<8x128xf32>
    %167 = vector.broadcast %10 : vector<1x128xf32> to vector<8x128xf32>
    %168 = arith.addf %167, %166 : vector<8x128xf32>
    %169 = arith.addf %146, %168 : vector<8x128xf32>
    %cst_62 = arith.constant 5.000000e-01 : f32
    %170 = vector.broadcast %cst_62 : f32 to vector<8x128xf32>
    %171 = arith.mulf %170, %169 : vector<8x128xf32>
    %172 = arith.select %15, %171, %169 : vector<8x128xi1>, vector<8x128xf32>
    %173 = math.tanh %172 : vector<8x128xf32>
    %cst_63 = arith.constant 5.000000e-01 : f32
    %174 = vector.broadcast %cst_63 : f32 to vector<8x128xf32>
    %175 = arith.mulf %174, %173 : vector<8x128xf32>
    %cst_64 = arith.constant 5.000000e-01 : f32
    %176 = vector.broadcast %cst_64 : f32 to vector<8x128xf32>
    %177 = arith.addf %175, %176 : vector<8x128xf32>
    %178 = arith.select %15, %177, %173 : vector<8x128xi1>, vector<8x128xf32>
    %179 = vector.extract_strided_slice %178 {offsets = [0, 0], sizes = [8, 32], strides = [1, 1]} : vector<8x128xf32> to vector<8x32xf32>
    %180 = vector.extract_strided_slice %178 {offsets = [0, 32], sizes = [8, 32], strides = [1, 1]} : vector<8x128xf32> to vector<8x32xf32>
    %181 = vector.extract_strided_slice %178 {offsets = [0, 64], sizes = [8, 32], strides = [1, 1]} : vector<8x128xf32> to vector<8x32xf32>
    %182 = vector.extract_strided_slice %178 {offsets = [0, 96], sizes = [8, 32], strides = [1, 1]} : vector<8x128xf32> to vector<8x32xf32>
    %183 = arith.mulf %87, %180 : vector<8x32xf32>
    %184 = arith.mulf %182, %179 : vector<8x32xf32>
    %185 = arith.addf %183, %184 : vector<8x32xf32>
    %cst_65 = arith.constant dense<0.000000e+00> : vector<8xf32>
    %186 = vector.multi_reduction <add>, %185, %cst_65 [1] : vector<8x32xf32> to vector<8xf32>
    %187 = vector.shape_cast %186 : vector<8xf32> to vector<8x1xf32>
    %cst_66 = arith.constant 3.200000e+01 : f32
    %188 = vector.broadcast %cst_66 : f32 to vector<8x1xf32>
    %189 = arith.divf %187, %188 : vector<8x1xf32>
    %190 = arith.mulf %185, %185 : vector<8x32xf32>
    %cst_67 = arith.constant dense<0.000000e+00> : vector<8xf32>
    %191 = vector.multi_reduction <add>, %190, %cst_67 [1] : vector<8x32xf32> to vector<8xf32>
    %192 = vector.shape_cast %191 : vector<8xf32> to vector<8x1xf32>
    %cst_68 = arith.constant 3.200000e+01 : f32
    %193 = vector.broadcast %cst_68 : f32 to vector<8x1xf32>
    %194 = arith.divf %192, %193 : vector<8x1xf32>
    %195 = arith.mulf %189, %189 : vector<8x1xf32>
    %196 = arith.subf %194, %195 : vector<8x1xf32>
    %197 = vector.broadcast %189 : vector<8x1xf32> to vector<8x32xf32>
    %198 = arith.subf %185, %197 : vector<8x32xf32>
    %199 = vector.broadcast %11 : vector<1x32xf32> to vector<8x32xf32>
    %200 = arith.mulf %199, %198 : vector<8x32xf32>
    %cst_69 = arith.constant 9.99999974E-6 : f32
    %201 = vector.broadcast %cst_69 : f32 to vector<8x1xf32>
    %202 = arith.addf %196, %201 : vector<8x1xf32>
    %203 = math.rsqrt %202 : vector<8x1xf32>
    %204 = vector.broadcast %203 : vector<8x1xf32> to vector<8x32xf32>
    %205 = arith.mulf %200, %204 : vector<8x32xf32>
    %206 = vector.broadcast %12 : vector<1x32xf32> to vector<8x32xf32>
    %207 = arith.addf %206, %205 : vector<8x32xf32>
    %208 = math.tanh %207 : vector<8x32xf32>
    %209 = arith.mulf %181, %208 : vector<8x32xf32>
    %210 = arith.index_cast %c1_i32 : i32 to index
    %c0_70 = arith.constant 0 : index
    %c0_71 = arith.constant 0 : index
    %211 = vector.load %arg14[%210, %c0_70, %c0_71] : memref<6x8x32xf32, #tpu.memory_space<vmem>>, vector<1x8x32xf32>
    %212 = vector.shape_cast %211 : vector<1x8x32xf32> to vector<8x32xf32>
    %213 = vector.shape_cast %209 : vector<8x32xf32> to vector<1x8x32xf32>
    tpu.vector_store %arg14[%210, %c0_70, %c0_71], %213 {strides = array<i32>} : memref<6x8x32xf32, #tpu.memory_space<vmem>>, vector<1x8x32xf32>,
    %c2_i32 = arith.constant 2 : i32
    %214 = arith.index_cast %c2_i32 : i32 to index
    %c0_72 = arith.constant 0 : index
    %c0_73 = arith.constant 0 : index
    %215 = vector.load %arg1[%214, %c0_72, %c0_73] : memref<6x8x32xf32, #tpu.memory_space<vmem>>, vector<1x8x32xf32>
    %216 = vector.shape_cast %215 : vector<1x8x32xf32> to vector<8x32xf32>
    %cst_74 = arith.constant dense<0.000000e+00> : vector<8x128xf32>
    %217 = tpu.matmul %216, %3, %cst_74 {dimension_numbers = #tpu.dot_dimension_numbers<[1], [0], [0], [1], [0, 0, 1, 1], [], []>} : vector<8x32xf32>, vector<32x128xf32>, vector<8x128xf32> -> vector<8x128xf32>
    %218 = vector.broadcast %5 : vector<1x128xf32> to vector<8x128xf32>
    %219 = arith.addf %217, %218 : vector<8x128xf32>
    %cst_75 = arith.constant dense<0.000000e+00> : vector<8x128xf32>
    %220 = tpu.matmul %209, %4, %cst_75 {dimension_numbers = #tpu.dot_dimension_numbers<[1], [0], [0], [1], [0, 0, 1, 1], [], []>} : vector<8x32xf32>, vector<32x128xf32>, vector<8x128xf32> -> vector<8x128xf32>
    %221 = vector.broadcast %6 : vector<1x128xf32> to vector<8x128xf32>
    %222 = arith.addf %220, %221 : vector<8x128xf32>
    %cst_76 = arith.constant dense<0.000000e+00> : vector<8xf32>
    %223 = vector.multi_reduction <add>, %219, %cst_76 [1] : vector<8x128xf32> to vector<8xf32>
    %224 = vector.shape_cast %223 : vector<8xf32> to vector<8x1xf32>
    %cst_77 = arith.constant 1.280000e+02 : f32
    %225 = vector.broadcast %cst_77 : f32 to vector<8x1xf32>
    %226 = arith.divf %224, %225 : vector<8x1xf32>
    %227 = arith.mulf %219, %219 : vector<8x128xf32>
    %cst_78 = arith.constant dense<0.000000e+00> : vector<8xf32>
    %228 = vector.multi_reduction <add>, %227, %cst_78 [1] : vector<8x128xf32> to vector<8xf32>
    %229 = vector.shape_cast %228 : vector<8xf32> to vector<8x1xf32>
    %cst_79 = arith.constant 1.280000e+02 : f32
    %230 = vector.broadcast %cst_79 : f32 to vector<8x1xf32>
    %231 = arith.divf %229, %230 : vector<8x1xf32>
    %232 = arith.mulf %226, %226 : vector<8x1xf32>
    %233 = arith.subf %231, %232 : vector<8x1xf32>
    %234 = vector.broadcast %226 : vector<8x1xf32> to vector<8x128xf32>
    %235 = arith.subf %219, %234 : vector<8x128xf32>
    %236 = vector.broadcast %7 : vector<1x128xf32> to vector<8x128xf32>
    %237 = arith.mulf %236, %235 : vector<8x128xf32>
    %cst_80 = arith.constant 9.99999974E-6 : f32
    %238 = vector.broadcast %cst_80 : f32 to vector<8x1xf32>
    %239 = arith.addf %233, %238 : vector<8x1xf32>
    %240 = math.rsqrt %239 : vector<8x1xf32>
    %241 = vector.broadcast %240 : vector<8x1xf32> to vector<8x128xf32>
    %242 = arith.mulf %237, %241 : vector<8x128xf32>
    %243 = vector.broadcast %8 : vector<1x128xf32> to vector<8x128xf32>
    %244 = arith.addf %243, %242 : vector<8x128xf32>
    %cst_81 = arith.constant dense<0.000000e+00> : vector<8xf32>
    %245 = vector.multi_reduction <add>, %222, %cst_81 [1] : vector<8x128xf32> to vector<8xf32>
    %246 = vector.shape_cast %245 : vector<8xf32> to vector<8x1xf32>
    %cst_82 = arith.constant 1.280000e+02 : f32
    %247 = vector.broadcast %cst_82 : f32 to vector<8x1xf32>
    %248 = arith.divf %246, %247 : vector<8x1xf32>
    %249 = arith.mulf %222, %222 : vector<8x128xf32>
    %cst_83 = arith.constant dense<0.000000e+00> : vector<8xf32>
    %250 = vector.multi_reduction <add>, %249, %cst_83 [1] : vector<8x128xf32> to vector<8xf32>
    %251 = vector.shape_cast %250 : vector<8xf32> to vector<8x1xf32>
    %cst_84 = arith.constant 1.280000e+02 : f32
    %252 = vector.broadcast %cst_84 : f32 to vector<8x1xf32>
    %253 = arith.divf %251, %252 : vector<8x1xf32>
    %254 = arith.mulf %248, %248 : vector<8x1xf32>
    %255 = arith.subf %253, %254 : vector<8x1xf32>
    %256 = vector.broadcast %248 : vector<8x1xf32> to vector<8x128xf32>
    %257 = arith.subf %222, %256 : vector<8x128xf32>
    %258 = vector.broadcast %9 : vector<1x128xf32> to vector<8x128xf32>
    %259 = arith.mulf %258, %257 : vector<8x128xf32>
    %cst_85 = arith.constant 9.99999974E-6 : f32
    %260 = vector.broadcast %cst_85 : f32 to vector<8x1xf32>
    %261 = arith.addf %255, %260 : vector<8x1xf32>
    %262 = math.rsqrt %261 : vector<8x1xf32>
    %263 = vector.broadcast %262 : vector<8x1xf32> to vector<8x128xf32>
    %264 = arith.mulf %259, %263 : vector<8x128xf32>
    %265 = vector.broadcast %10 : vector<1x128xf32> to vector<8x128xf32>
    %266 = arith.addf %265, %264 : vector<8x128xf32>
    %267 = arith.addf %244, %266 : vector<8x128xf32>
    %cst_86 = arith.constant 5.000000e-01 : f32
    %268 = vector.broadcast %cst_86 : f32 to vector<8x128xf32>
    %269 = arith.mulf %268, %267 : vector<8x128xf32>
    %270 = arith.select %15, %269, %267 : vector<8x128xi1>, vector<8x128xf32>
    %271 = math.tanh %270 : vector<8x128xf32>
    %cst_87 = arith.constant 5.000000e-01 : f32
    %272 = vector.broadcast %cst_87 : f32 to vector<8x128xf32>
    %273 = arith.mulf %272, %271 : vector<8x128xf32>
    %cst_88 = arith.constant 5.000000e-01 : f32
    %274 = vector.broadcast %cst_88 : f32 to vector<8x128xf32>
    %275 = arith.addf %273, %274 : vector<8x128xf32>
    %276 = arith.select %15, %275, %271 : vector<8x128xi1>, vector<8x128xf32>
    %277 = vector.extract_strided_slice %276 {offsets = [0, 0], sizes = [8, 32], strides = [1, 1]} : vector<8x128xf32> to vector<8x32xf32>
    %278 = vector.extract_strided_slice %276 {offsets = [0, 32], sizes = [8, 32], strides = [1, 1]} : vector<8x128xf32> to vector<8x32xf32>
    %279 = vector.extract_strided_slice %276 {offsets = [0, 64], sizes = [8, 32], strides = [1, 1]} : vector<8x128xf32> to vector<8x32xf32>
    %280 = vector.extract_strided_slice %276 {offsets = [0, 96], sizes = [8, 32], strides = [1, 1]} : vector<8x128xf32> to vector<8x32xf32>
    %281 = arith.mulf %185, %278 : vector<8x32xf32>
    %282 = arith.mulf %280, %277 : vector<8x32xf32>
    %283 = arith.addf %281, %282 : vector<8x32xf32>
    %cst_89 = arith.constant dense<0.000000e+00> : vector<8xf32>
    %284 = vector.multi_reduction <add>, %283, %cst_89 [1] : vector<8x32xf32> to vector<8xf32>
    %285 = vector.shape_cast %284 : vector<8xf32> to vector<8x1xf32>
    %cst_90 = arith.constant 3.200000e+01 : f32
    %286 = vector.broadcast %cst_90 : f32 to vector<8x1xf32>
    %287 = arith.divf %285, %286 : vector<8x1xf32>
    %288 = arith.mulf %283, %283 : vector<8x32xf32>
    %cst_91 = arith.constant dense<0.000000e+00> : vector<8xf32>
    %289 = vector.multi_reduction <add>, %288, %cst_91 [1] : vector<8x32xf32> to vector<8xf32>
    %290 = vector.shape_cast %289 : vector<8xf32> to vector<8x1xf32>
    %cst_92 = arith.constant 3.200000e+01 : f32
    %291 = vector.broadcast %cst_92 : f32 to vector<8x1xf32>
    %292 = arith.divf %290, %291 : vector<8x1xf32>
    %293 = arith.mulf %287, %287 : vector<8x1xf32>
    %294 = arith.subf %292, %293 : vector<8x1xf32>
    %295 = vector.broadcast %287 : vector<8x1xf32> to vector<8x32xf32>
    %296 = arith.subf %283, %295 : vector<8x32xf32>
    %297 = vector.broadcast %11 : vector<1x32xf32> to vector<8x32xf32>
    %298 = arith.mulf %297, %296 : vector<8x32xf32>
    %cst_93 = arith.constant 9.99999974E-6 : f32
    %299 = vector.broadcast %cst_93 : f32 to vector<8x1xf32>
    %300 = arith.addf %294, %299 : vector<8x1xf32>
    %301 = math.rsqrt %300 : vector<8x1xf32>
    %302 = vector.broadcast %301 : vector<8x1xf32> to vector<8x32xf32>
    %303 = arith.mulf %298, %302 : vector<8x32xf32>
    %304 = vector.broadcast %12 : vector<1x32xf32> to vector<8x32xf32>
    %305 = arith.addf %304, %303 : vector<8x32xf32>
    %306 = math.tanh %305 : vector<8x32xf32>
    %307 = arith.mulf %279, %306 : vector<8x32xf32>
    %308 = arith.index_cast %c2_i32 : i32 to index
    %c0_94 = arith.constant 0 : index
    %c0_95 = arith.constant 0 : index
    %309 = vector.load %arg14[%308, %c0_94, %c0_95] : memref<6x8x32xf32, #tpu.memory_space<vmem>>, vector<1x8x32xf32>
    %310 = vector.shape_cast %309 : vector<1x8x32xf32> to vector<8x32xf32>
    %311 = vector.shape_cast %307 : vector<8x32xf32> to vector<1x8x32xf32>
    tpu.vector_store %arg14[%308, %c0_94, %c0_95], %311 {strides = array<i32>} : memref<6x8x32xf32, #tpu.memory_space<vmem>>, vector<1x8x32xf32>,
    %c3_i32 = arith.constant 3 : i32
    %312 = arith.index_cast %c3_i32 : i32 to index
    %c0_96 = arith.constant 0 : index
    %c0_97 = arith.constant 0 : index
    %313 = vector.load %arg1[%312, %c0_96, %c0_97] : memref<6x8x32xf32, #tpu.memory_space<vmem>>, vector<1x8x32xf32>
    %314 = vector.shape_cast %313 : vector<1x8x32xf32> to vector<8x32xf32>
    %cst_98 = arith.constant dense<0.000000e+00> : vector<8x128xf32>
    %315 = tpu.matmul %314, %3, %cst_98 {dimension_numbers = #tpu.dot_dimension_numbers<[1], [0], [0], [1], [0, 0, 1, 1], [], []>} : vector<8x32xf32>, vector<32x128xf32>, vector<8x128xf32> -> vector<8x128xf32>
    %316 = vector.broadcast %5 : vector<1x128xf32> to vector<8x128xf32>
    %317 = arith.addf %315, %316 : vector<8x128xf32>
    %cst_99 = arith.constant dense<0.000000e+00> : vector<8x128xf32>
    %318 = tpu.matmul %307, %4, %cst_99 {dimension_numbers = #tpu.dot_dimension_numbers<[1], [0], [0], [1], [0, 0, 1, 1], [], []>} : vector<8x32xf32>, vector<32x128xf32>, vector<8x128xf32> -> vector<8x128xf32>
    %319 = vector.broadcast %6 : vector<1x128xf32> to vector<8x128xf32>
    %320 = arith.addf %318, %319 : vector<8x128xf32>
    %cst_100 = arith.constant dense<0.000000e+00> : vector<8xf32>
    %321 = vector.multi_reduction <add>, %317, %cst_100 [1] : vector<8x128xf32> to vector<8xf32>
    %322 = vector.shape_cast %321 : vector<8xf32> to vector<8x1xf32>
    %cst_101 = arith.constant 1.280000e+02 : f32
    %323 = vector.broadcast %cst_101 : f32 to vector<8x1xf32>
    %324 = arith.divf %322, %323 : vector<8x1xf32>
    %325 = arith.mulf %317, %317 : vector<8x128xf32>
    %cst_102 = arith.constant dense<0.000000e+00> : vector<8xf32>
    %326 = vector.multi_reduction <add>, %325, %cst_102 [1] : vector<8x128xf32> to vector<8xf32>
    %327 = vector.shape_cast %326 : vector<8xf32> to vector<8x1xf32>
    %cst_103 = arith.constant 1.280000e+02 : f32
    %328 = vector.broadcast %cst_103 : f32 to vector<8x1xf32>
    %329 = arith.divf %327, %328 : vector<8x1xf32>
    %330 = arith.mulf %324, %324 : vector<8x1xf32>
    %331 = arith.subf %329, %330 : vector<8x1xf32>
    %332 = vector.broadcast %324 : vector<8x1xf32> to vector<8x128xf32>
    %333 = arith.subf %317, %332 : vector<8x128xf32>
    %334 = vector.broadcast %7 : vector<1x128xf32> to vector<8x128xf32>
    %335 = arith.mulf %334, %333 : vector<8x128xf32>
    %cst_104 = arith.constant 9.99999974E-6 : f32
    %336 = vector.broadcast %cst_104 : f32 to vector<8x1xf32>
    %337 = arith.addf %331, %336 : vector<8x1xf32>
    %338 = math.rsqrt %337 : vector<8x1xf32>
    %339 = vector.broadcast %338 : vector<8x1xf32> to vector<8x128xf32>
    %340 = arith.mulf %335, %339 : vector<8x128xf32>
    %341 = vector.broadcast %8 : vector<1x128xf32> to vector<8x128xf32>
    %342 = arith.addf %341, %340 : vector<8x128xf32>
    %cst_105 = arith.constant dense<0.000000e+00> : vector<8xf32>
    %343 = vector.multi_reduction <add>, %320, %cst_105 [1] : vector<8x128xf32> to vector<8xf32>
    %344 = vector.shape_cast %343 : vector<8xf32> to vector<8x1xf32>
    %cst_106 = arith.constant 1.280000e+02 : f32
    %345 = vector.broadcast %cst_106 : f32 to vector<8x1xf32>
    %346 = arith.divf %344, %345 : vector<8x1xf32>
    %347 = arith.mulf %320, %320 : vector<8x128xf32>
    %cst_107 = arith.constant dense<0.000000e+00> : vector<8xf32>
    %348 = vector.multi_reduction <add>, %347, %cst_107 [1] : vector<8x128xf32> to vector<8xf32>
    %349 = vector.shape_cast %348 : vector<8xf32> to vector<8x1xf32>
    %cst_108 = arith.constant 1.280000e+02 : f32
    %350 = vector.broadcast %cst_108 : f32 to vector<8x1xf32>
    %351 = arith.divf %349, %350 : vector<8x1xf32>
    %352 = arith.mulf %346, %346 : vector<8x1xf32>
    %353 = arith.subf %351, %352 : vector<8x1xf32>
    %354 = vector.broadcast %346 : vector<8x1xf32> to vector<8x128xf32>
    %355 = arith.subf %320, %354 : vector<8x128xf32>
    %356 = vector.broadcast %9 : vector<1x128xf32> to vector<8x128xf32>
    %357 = arith.mulf %356, %355 : vector<8x128xf32>
    %cst_109 = arith.constant 9.99999974E-6 : f32
    %358 = vector.broadcast %cst_109 : f32 to vector<8x1xf32>
    %359 = arith.addf %353, %358 : vector<8x1xf32>
    %360 = math.rsqrt %359 : vector<8x1xf32>
    %361 = vector.broadcast %360 : vector<8x1xf32> to vector<8x128xf32>
    %362 = arith.mulf %357, %361 : vector<8x128xf32>
    %363 = vector.broadcast %10 : vector<1x128xf32> to vector<8x128xf32>
    %364 = arith.addf %363, %362 : vector<8x128xf32>
    %365 = arith.addf %342, %364 : vector<8x128xf32>
    %cst_110 = arith.constant 5.000000e-01 : f32
    %366 = vector.broadcast %cst_110 : f32 to vector<8x128xf32>
    %367 = arith.mulf %366, %365 : vector<8x128xf32>
    %368 = arith.select %15, %367, %365 : vector<8x128xi1>, vector<8x128xf32>
    %369 = math.tanh %368 : vector<8x128xf32>
    %cst_111 = arith.constant 5.000000e-01 : f32
    %370 = vector.broadcast %cst_111 : f32 to vector<8x128xf32>
    %371 = arith.mulf %370, %369 : vector<8x128xf32>
    %cst_112 = arith.constant 5.000000e-01 : f32
    %372 = vector.broadcast %cst_112 : f32 to vector<8x128xf32>
    %373 = arith.addf %371, %372 : vector<8x128xf32>
    %374 = arith.select %15, %373, %369 : vector<8x128xi1>, vector<8x128xf32>
    %375 = vector.extract_strided_slice %374 {offsets = [0, 0], sizes = [8, 32], strides = [1, 1]} : vector<8x128xf32> to vector<8x32xf32>
    %376 = vector.extract_strided_slice %374 {offsets = [0, 32], sizes = [8, 32], strides = [1, 1]} : vector<8x128xf32> to vector<8x32xf32>
    %377 = vector.extract_strided_slice %374 {offsets = [0, 64], sizes = [8, 32], strides = [1, 1]} : vector<8x128xf32> to vector<8x32xf32>
    %378 = vector.extract_strided_slice %374 {offsets = [0, 96], sizes = [8, 32], strides = [1, 1]} : vector<8x128xf32> to vector<8x32xf32>
    %379 = arith.mulf %283, %376 : vector<8x32xf32>
    %380 = arith.mulf %378, %375 : vector<8x32xf32>
    %381 = arith.addf %379, %380 : vector<8x32xf32>
    %cst_113 = arith.constant dense<0.000000e+00> : vector<8xf32>
    %382 = vector.multi_reduction <add>, %381, %cst_113 [1] : vector<8x32xf32> to vector<8xf32>
    %383 = vector.shape_cast %382 : vector<8xf32> to vector<8x1xf32>
    %cst_114 = arith.constant 3.200000e+01 : f32
    %384 = vector.broadcast %cst_114 : f32 to vector<8x1xf32>
    %385 = arith.divf %383, %384 : vector<8x1xf32>
    %386 = arith.mulf %381, %381 : vector<8x32xf32>
    %cst_115 = arith.constant dense<0.000000e+00> : vector<8xf32>
    %387 = vector.multi_reduction <add>, %386, %cst_115 [1] : vector<8x32xf32> to vector<8xf32>
    %388 = vector.shape_cast %387 : vector<8xf32> to vector<8x1xf32>
    %cst_116 = arith.constant 3.200000e+01 : f32
    %389 = vector.broadcast %cst_116 : f32 to vector<8x1xf32>
    %390 = arith.divf %388, %389 : vector<8x1xf32>
    %391 = arith.mulf %385, %385 : vector<8x1xf32>
    %392 = arith.subf %390, %391 : vector<8x1xf32>
    %393 = vector.broadcast %385 : vector<8x1xf32> to vector<8x32xf32>
    %394 = arith.subf %381, %393 : vector<8x32xf32>
    %395 = vector.broadcast %11 : vector<1x32xf32> to vector<8x32xf32>
    %396 = arith.mulf %395, %394 : vector<8x32xf32>
    %cst_117 = arith.constant 9.99999974E-6 : f32
    %397 = vector.broadcast %cst_117 : f32 to vector<8x1xf32>
    %398 = arith.addf %392, %397 : vector<8x1xf32>
    %399 = math.rsqrt %398 : vector<8x1xf32>
    %400 = vector.broadcast %399 : vector<8x1xf32> to vector<8x32xf32>
    %401 = arith.mulf %396, %400 : vector<8x32xf32>
    %402 = vector.broadcast %12 : vector<1x32xf32> to vector<8x32xf32>
    %403 = arith.addf %402, %401 : vector<8x32xf32>
    %404 = math.tanh %403 : vector<8x32xf32>
    %405 = arith.mulf %377, %404 : vector<8x32xf32>
    %406 = arith.index_cast %c3_i32 : i32 to index
    %c0_118 = arith.constant 0 : index
    %c0_119 = arith.constant 0 : index
    %407 = vector.load %arg14[%406, %c0_118, %c0_119] : memref<6x8x32xf32, #tpu.memory_space<vmem>>, vector<1x8x32xf32>
    %408 = vector.shape_cast %407 : vector<1x8x32xf32> to vector<8x32xf32>
    %409 = vector.shape_cast %405 : vector<8x32xf32> to vector<1x8x32xf32>
    tpu.vector_store %arg14[%406, %c0_118, %c0_119], %409 {strides = array<i32>} : memref<6x8x32xf32, #tpu.memory_space<vmem>>, vector<1x8x32xf32>,
    %c4_i32 = arith.constant 4 : i32
    %410 = arith.index_cast %c4_i32 : i32 to index
    %c0_120 = arith.constant 0 : index
    %c0_121 = arith.constant 0 : index
    %411 = vector.load %arg1[%410, %c0_120, %c0_121] : memref<6x8x32xf32, #tpu.memory_space<vmem>>, vector<1x8x32xf32>
    %412 = vector.shape_cast %411 : vector<1x8x32xf32> to vector<8x32xf32>
    %cst_122 = arith.constant dense<0.000000e+00> : vector<8x128xf32>
    %413 = tpu.matmul %412, %3, %cst_122 {dimension_numbers = #tpu.dot_dimension_numbers<[1], [0], [0], [1], [0, 0, 1, 1], [], []>} : vector<8x32xf32>, vector<32x128xf32>, vector<8x128xf32> -> vector<8x128xf32>
    %414 = vector.broadcast %5 : vector<1x128xf32> to vector<8x128xf32>
    %415 = arith.addf %413, %414 : vector<8x128xf32>
    %cst_123 = arith.constant dense<0.000000e+00> : vector<8x128xf32>
    %416 = tpu.matmul %405, %4, %cst_123 {dimension_numbers = #tpu.dot_dimension_numbers<[1], [0], [0], [1], [0, 0, 1, 1], [], []>} : vector<8x32xf32>, vector<32x128xf32>, vector<8x128xf32> -> vector<8x128xf32>
    %417 = vector.broadcast %6 : vector<1x128xf32> to vector<8x128xf32>
    %418 = arith.addf %416, %417 : vector<8x128xf32>
    %cst_124 = arith.constant dense<0.000000e+00> : vector<8xf32>
    %419 = vector.multi_reduction <add>, %415, %cst_124 [1] : vector<8x128xf32> to vector<8xf32>
    %420 = vector.shape_cast %419 : vector<8xf32> to vector<8x1xf32>
    %cst_125 = arith.constant 1.280000e+02 : f32
    %421 = vector.broadcast %cst_125 : f32 to vector<8x1xf32>
    %422 = arith.divf %420, %421 : vector<8x1xf32>
    %423 = arith.mulf %415, %415 : vector<8x128xf32>
    %cst_126 = arith.constant dense<0.000000e+00> : vector<8xf32>
    %424 = vector.multi_reduction <add>, %423, %cst_126 [1] : vector<8x128xf32> to vector<8xf32>
    %425 = vector.shape_cast %424 : vector<8xf32> to vector<8x1xf32>
    %cst_127 = arith.constant 1.280000e+02 : f32
    %426 = vector.broadcast %cst_127 : f32 to vector<8x1xf32>
    %427 = arith.divf %425, %426 : vector<8x1xf32>
    %428 = arith.mulf %422, %422 : vector<8x1xf32>
    %429 = arith.subf %427, %428 : vector<8x1xf32>
    %430 = vector.broadcast %422 : vector<8x1xf32> to vector<8x128xf32>
    %431 = arith.subf %415, %430 : vector<8x128xf32>
    %432 = vector.broadcast %7 : vector<1x128xf32> to vector<8x128xf32>
    %433 = arith.mulf %432, %431 : vector<8x128xf32>
    %cst_128 = arith.constant 9.99999974E-6 : f32
    %434 = vector.broadcast %cst_128 : f32 to vector<8x1xf32>
    %435 = arith.addf %429, %434 : vector<8x1xf32>
    %436 = math.rsqrt %435 : vector<8x1xf32>
    %437 = vector.broadcast %436 : vector<8x1xf32> to vector<8x128xf32>
    %438 = arith.mulf %433, %437 : vector<8x128xf32>
    %439 = vector.broadcast %8 : vector<1x128xf32> to vector<8x128xf32>
    %440 = arith.addf %439, %438 : vector<8x128xf32>
    %cst_129 = arith.constant dense<0.000000e+00> : vector<8xf32>
    %441 = vector.multi_reduction <add>, %418, %cst_129 [1] : vector<8x128xf32> to vector<8xf32>
    %442 = vector.shape_cast %441 : vector<8xf32> to vector<8x1xf32>
    %cst_130 = arith.constant 1.280000e+02 : f32
    %443 = vector.broadcast %cst_130 : f32 to vector<8x1xf32>
    %444 = arith.divf %442, %443 : vector<8x1xf32>
    %445 = arith.mulf %418, %418 : vector<8x128xf32>
    %cst_131 = arith.constant dense<0.000000e+00> : vector<8xf32>
    %446 = vector.multi_reduction <add>, %445, %cst_131 [1] : vector<8x128xf32> to vector<8xf32>
    %447 = vector.shape_cast %446 : vector<8xf32> to vector<8x1xf32>
    %cst_132 = arith.constant 1.280000e+02 : f32
    %448 = vector.broadcast %cst_132 : f32 to vector<8x1xf32>
    %449 = arith.divf %447, %448 : vector<8x1xf32>
    %450 = arith.mulf %444, %444 : vector<8x1xf32>
    %451 = arith.subf %449, %450 : vector<8x1xf32>
    %452 = vector.broadcast %444 : vector<8x1xf32> to vector<8x128xf32>
    %453 = arith.subf %418, %452 : vector<8x128xf32>
    %454 = vector.broadcast %9 : vector<1x128xf32> to vector<8x128xf32>
    %455 = arith.mulf %454, %453 : vector<8x128xf32>
    %cst_133 = arith.constant 9.99999974E-6 : f32
    %456 = vector.broadcast %cst_133 : f32 to vector<8x1xf32>
    %457 = arith.addf %451, %456 : vector<8x1xf32>
    %458 = math.rsqrt %457 : vector<8x1xf32>
    %459 = vector.broadcast %458 : vector<8x1xf32> to vector<8x128xf32>
    %460 = arith.mulf %455, %459 : vector<8x128xf32>
    %461 = vector.broadcast %10 : vector<1x128xf32> to vector<8x128xf32>
    %462 = arith.addf %461, %460 : vector<8x128xf32>
    %463 = arith.addf %440, %462 : vector<8x128xf32>
    %cst_134 = arith.constant 5.000000e-01 : f32
    %464 = vector.broadcast %cst_134 : f32 to vector<8x128xf32>
    %465 = arith.mulf %464, %463 : vector<8x128xf32>
    %466 = arith.select %15, %465, %463 : vector<8x128xi1>, vector<8x128xf32>
    %467 = math.tanh %466 : vector<8x128xf32>
    %cst_135 = arith.constant 5.000000e-01 : f32
    %468 = vector.broadcast %cst_135 : f32 to vector<8x128xf32>
    %469 = arith.mulf %468, %467 : vector<8x128xf32>
    %cst_136 = arith.constant 5.000000e-01 : f32
    %470 = vector.broadcast %cst_136 : f32 to vector<8x128xf32>
    %471 = arith.addf %469, %470 : vector<8x128xf32>
    %472 = arith.select %15, %471, %467 : vector<8x128xi1>, vector<8x128xf32>
    %473 = vector.extract_strided_slice %472 {offsets = [0, 0], sizes = [8, 32], strides = [1, 1]} : vector<8x128xf32> to vector<8x32xf32>
    %474 = vector.extract_strided_slice %472 {offsets = [0, 32], sizes = [8, 32], strides = [1, 1]} : vector<8x128xf32> to vector<8x32xf32>
    %475 = vector.extract_strided_slice %472 {offsets = [0, 64], sizes = [8, 32], strides = [1, 1]} : vector<8x128xf32> to vector<8x32xf32>
    %476 = vector.extract_strided_slice %472 {offsets = [0, 96], sizes = [8, 32], strides = [1, 1]} : vector<8x128xf32> to vector<8x32xf32>
    %477 = arith.mulf %381, %474 : vector<8x32xf32>
    %478 = arith.mulf %476, %473 : vector<8x32xf32>
    %479 = arith.addf %477, %478 : vector<8x32xf32>
    %cst_137 = arith.constant dense<0.000000e+00> : vector<8xf32>
    %480 = vector.multi_reduction <add>, %479, %cst_137 [1] : vector<8x32xf32> to vector<8xf32>
    %481 = vector.shape_cast %480 : vector<8xf32> to vector<8x1xf32>
    %cst_138 = arith.constant 3.200000e+01 : f32
    %482 = vector.broadcast %cst_138 : f32 to vector<8x1xf32>
    %483 = arith.divf %481, %482 : vector<8x1xf32>
    %484 = arith.mulf %479, %479 : vector<8x32xf32>
    %cst_139 = arith.constant dense<0.000000e+00> : vector<8xf32>
    %485 = vector.multi_reduction <add>, %484, %cst_139 [1] : vector<8x32xf32> to vector<8xf32>
    %486 = vector.shape_cast %485 : vector<8xf32> to vector<8x1xf32>
    %cst_140 = arith.constant 3.200000e+01 : f32
    %487 = vector.broadcast %cst_140 : f32 to vector<8x1xf32>
    %488 = arith.divf %486, %487 : vector<8x1xf32>
    %489 = arith.mulf %483, %483 : vector<8x1xf32>
    %490 = arith.subf %488, %489 : vector<8x1xf32>
    %491 = vector.broadcast %483 : vector<8x1xf32> to vector<8x32xf32>
    %492 = arith.subf %479, %491 : vector<8x32xf32>
    %493 = vector.broadcast %11 : vector<1x32xf32> to vector<8x32xf32>
    %494 = arith.mulf %493, %492 : vector<8x32xf32>
    %cst_141 = arith.constant 9.99999974E-6 : f32
    %495 = vector.broadcast %cst_141 : f32 to vector<8x1xf32>
    %496 = arith.addf %490, %495 : vector<8x1xf32>
    %497 = math.rsqrt %496 : vector<8x1xf32>
    %498 = vector.broadcast %497 : vector<8x1xf32> to vector<8x32xf32>
    %499 = arith.mulf %494, %498 : vector<8x32xf32>
    %500 = vector.broadcast %12 : vector<1x32xf32> to vector<8x32xf32>
    %501 = arith.addf %500, %499 : vector<8x32xf32>
    %502 = math.tanh %501 : vector<8x32xf32>
    %503 = arith.mulf %475, %502 : vector<8x32xf32>
    %504 = arith.index_cast %c4_i32 : i32 to index
    %c0_142 = arith.constant 0 : index
    %c0_143 = arith.constant 0 : index
    %505 = vector.load %arg14[%504, %c0_142, %c0_143] : memref<6x8x32xf32, #tpu.memory_space<vmem>>, vector<1x8x32xf32>
    %506 = vector.shape_cast %505 : vector<1x8x32xf32> to vector<8x32xf32>
    %507 = vector.shape_cast %503 : vector<8x32xf32> to vector<1x8x32xf32>
    tpu.vector_store %arg14[%504, %c0_142, %c0_143], %507 {strides = array<i32>} : memref<6x8x32xf32, #tpu.memory_space<vmem>>, vector<1x8x32xf32>,
    %c5_i32 = arith.constant 5 : i32
    %508 = arith.index_cast %c5_i32 : i32 to index
    %c0_144 = arith.constant 0 : index
    %c0_145 = arith.constant 0 : index
    %509 = vector.load %arg1[%508, %c0_144, %c0_145] : memref<6x8x32xf32, #tpu.memory_space<vmem>>, vector<1x8x32xf32>
    %510 = vector.shape_cast %509 : vector<1x8x32xf32> to vector<8x32xf32>
    %cst_146 = arith.constant dense<0.000000e+00> : vector<8x128xf32>
    %511 = tpu.matmul %510, %3, %cst_146 {dimension_numbers = #tpu.dot_dimension_numbers<[1], [0], [0], [1], [0, 0, 1, 1], [], []>} : vector<8x32xf32>, vector<32x128xf32>, vector<8x128xf32> -> vector<8x128xf32>
    %512 = vector.broadcast %5 : vector<1x128xf32> to vector<8x128xf32>
    %513 = arith.addf %511, %512 : vector<8x128xf32>
    %cst_147 = arith.constant dense<0.000000e+00> : vector<8x128xf32>
    %514 = tpu.matmul %503, %4, %cst_147 {dimension_numbers = #tpu.dot_dimension_numbers<[1], [0], [0], [1], [0, 0, 1, 1], [], []>} : vector<8x32xf32>, vector<32x128xf32>, vector<8x128xf32> -> vector<8x128xf32>
    %515 = vector.broadcast %6 : vector<1x128xf32> to vector<8x128xf32>
    %516 = arith.addf %514, %515 : vector<8x128xf32>
    %cst_148 = arith.constant dense<0.000000e+00> : vector<8xf32>
    %517 = vector.multi_reduction <add>, %513, %cst_148 [1] : vector<8x128xf32> to vector<8xf32>
    %518 = vector.shape_cast %517 : vector<8xf32> to vector<8x1xf32>
    %cst_149 = arith.constant 1.280000e+02 : f32
    %519 = vector.broadcast %cst_149 : f32 to vector<8x1xf32>
    %520 = arith.divf %518, %519 : vector<8x1xf32>
    %521 = arith.mulf %513, %513 : vector<8x128xf32>
    %cst_150 = arith.constant dense<0.000000e+00> : vector<8xf32>
    %522 = vector.multi_reduction <add>, %521, %cst_150 [1] : vector<8x128xf32> to vector<8xf32>
    %523 = vector.shape_cast %522 : vector<8xf32> to vector<8x1xf32>
    %cst_151 = arith.constant 1.280000e+02 : f32
    %524 = vector.broadcast %cst_151 : f32 to vector<8x1xf32>
    %525 = arith.divf %523, %524 : vector<8x1xf32>
    %526 = arith.mulf %520, %520 : vector<8x1xf32>
    %527 = arith.subf %525, %526 : vector<8x1xf32>
    %528 = vector.broadcast %520 : vector<8x1xf32> to vector<8x128xf32>
    %529 = arith.subf %513, %528 : vector<8x128xf32>
    %530 = vector.broadcast %7 : vector<1x128xf32> to vector<8x128xf32>
    %531 = arith.mulf %530, %529 : vector<8x128xf32>
    %cst_152 = arith.constant 9.99999974E-6 : f32
    %532 = vector.broadcast %cst_152 : f32 to vector<8x1xf32>
    %533 = arith.addf %527, %532 : vector<8x1xf32>
    %534 = math.rsqrt %533 : vector<8x1xf32>
    %535 = vector.broadcast %534 : vector<8x1xf32> to vector<8x128xf32>
    %536 = arith.mulf %531, %535 : vector<8x128xf32>
    %537 = vector.broadcast %8 : vector<1x128xf32> to vector<8x128xf32>
    %538 = arith.addf %537, %536 : vector<8x128xf32>
    %cst_153 = arith.constant dense<0.000000e+00> : vector<8xf32>
    %539 = vector.multi_reduction <add>, %516, %cst_153 [1] : vector<8x128xf32> to vector<8xf32>
    %540 = vector.shape_cast %539 : vector<8xf32> to vector<8x1xf32>
    %cst_154 = arith.constant 1.280000e+02 : f32
    %541 = vector.broadcast %cst_154 : f32 to vector<8x1xf32>
    %542 = arith.divf %540, %541 : vector<8x1xf32>
    %543 = arith.mulf %516, %516 : vector<8x128xf32>
    %cst_155 = arith.constant dense<0.000000e+00> : vector<8xf32>
    %544 = vector.multi_reduction <add>, %543, %cst_155 [1] : vector<8x128xf32> to vector<8xf32>
    %545 = vector.shape_cast %544 : vector<8xf32> to vector<8x1xf32>
    %cst_156 = arith.constant 1.280000e+02 : f32
    %546 = vector.broadcast %cst_156 : f32 to vector<8x1xf32>
    %547 = arith.divf %545, %546 : vector<8x1xf32>
    %548 = arith.mulf %542, %542 : vector<8x1xf32>
    %549 = arith.subf %547, %548 : vector<8x1xf32>
    %550 = vector.broadcast %542 : vector<8x1xf32> to vector<8x128xf32>
    %551 = arith.subf %516, %550 : vector<8x128xf32>
    %552 = vector.broadcast %9 : vector<1x128xf32> to vector<8x128xf32>
    %553 = arith.mulf %552, %551 : vector<8x128xf32>
    %cst_157 = arith.constant 9.99999974E-6 : f32
    %554 = vector.broadcast %cst_157 : f32 to vector<8x1xf32>
    %555 = arith.addf %549, %554 : vector<8x1xf32>
    %556 = math.rsqrt %555 : vector<8x1xf32>
    %557 = vector.broadcast %556 : vector<8x1xf32> to vector<8x128xf32>
    %558 = arith.mulf %553, %557 : vector<8x128xf32>
    %559 = vector.broadcast %10 : vector<1x128xf32> to vector<8x128xf32>
    %560 = arith.addf %559, %558 : vector<8x128xf32>
    %561 = arith.addf %538, %560 : vector<8x128xf32>
    %cst_158 = arith.constant 5.000000e-01 : f32
    %562 = vector.broadcast %cst_158 : f32 to vector<8x128xf32>
    %563 = arith.mulf %562, %561 : vector<8x128xf32>
    %564 = arith.select %15, %563, %561 : vector<8x128xi1>, vector<8x128xf32>
    %565 = math.tanh %564 : vector<8x128xf32>
    %cst_159 = arith.constant 5.000000e-01 : f32
    %566 = vector.broadcast %cst_159 : f32 to vector<8x128xf32>
    %567 = arith.mulf %566, %565 : vector<8x128xf32>
    %cst_160 = arith.constant 5.000000e-01 : f32
    %568 = vector.broadcast %cst_160 : f32 to vector<8x128xf32>
    %569 = arith.addf %567, %568 : vector<8x128xf32>
    %570 = arith.select %15, %569, %565 : vector<8x128xi1>, vector<8x128xf32>
    %571 = vector.extract_strided_slice %570 {offsets = [0, 0], sizes = [8, 32], strides = [1, 1]} : vector<8x128xf32> to vector<8x32xf32>
    %572 = vector.extract_strided_slice %570 {offsets = [0, 32], sizes = [8, 32], strides = [1, 1]} : vector<8x128xf32> to vector<8x32xf32>
    %573 = vector.extract_strided_slice %570 {offsets = [0, 64], sizes = [8, 32], strides = [1, 1]} : vector<8x128xf32> to vector<8x32xf32>
    %574 = vector.extract_strided_slice %570 {offsets = [0, 96], sizes = [8, 32], strides = [1, 1]} : vector<8x128xf32> to vector<8x32xf32>
    %575 = arith.mulf %479, %572 : vector<8x32xf32>
    %576 = arith.mulf %574, %571 : vector<8x32xf32>
    %577 = arith.addf %575, %576 : vector<8x32xf32>
    %cst_161 = arith.constant dense<0.000000e+00> : vector<8xf32>
    %578 = vector.multi_reduction <add>, %577, %cst_161 [1] : vector<8x32xf32> to vector<8xf32>
    %579 = vector.shape_cast %578 : vector<8xf32> to vector<8x1xf32>
    %cst_162 = arith.constant 3.200000e+01 : f32
    %580 = vector.broadcast %cst_162 : f32 to vector<8x1xf32>
    %581 = arith.divf %579, %580 : vector<8x1xf32>
    %582 = arith.mulf %577, %577 : vector<8x32xf32>
    %cst_163 = arith.constant dense<0.000000e+00> : vector<8xf32>
    %583 = vector.multi_reduction <add>, %582, %cst_163 [1] : vector<8x32xf32> to vector<8xf32>
    %584 = vector.shape_cast %583 : vector<8xf32> to vector<8x1xf32>
    %cst_164 = arith.constant 3.200000e+01 : f32
    %585 = vector.broadcast %cst_164 : f32 to vector<8x1xf32>
    %586 = arith.divf %584, %585 : vector<8x1xf32>
    %587 = arith.mulf %581, %581 : vector<8x1xf32>
    %588 = arith.subf %586, %587 : vector<8x1xf32>
    %589 = vector.broadcast %581 : vector<8x1xf32> to vector<8x32xf32>
    %590 = arith.subf %577, %589 : vector<8x32xf32>
    %591 = vector.broadcast %11 : vector<1x32xf32> to vector<8x32xf32>
    %592 = arith.mulf %591, %590 : vector<8x32xf32>
    %cst_165 = arith.constant 9.99999974E-6 : f32
    %593 = vector.broadcast %cst_165 : f32 to vector<8x1xf32>
    %594 = arith.addf %588, %593 : vector<8x1xf32>
    %595 = math.rsqrt %594 : vector<8x1xf32>
    %596 = vector.broadcast %595 : vector<8x1xf32> to vector<8x32xf32>
    %597 = arith.mulf %592, %596 : vector<8x32xf32>
    %598 = vector.broadcast %12 : vector<1x32xf32> to vector<8x32xf32>
    %599 = arith.addf %598, %597 : vector<8x32xf32>
    %600 = math.tanh %599 : vector<8x32xf32>
    %601 = arith.mulf %573, %600 : vector<8x32xf32>
    %602 = arith.index_cast %c5_i32 : i32 to index
    %c0_166 = arith.constant 0 : index
    %c0_167 = arith.constant 0 : index
    %603 = vector.load %arg14[%602, %c0_166, %c0_167] : memref<6x8x32xf32, #tpu.memory_space<vmem>>, vector<1x8x32xf32>
    %604 = vector.shape_cast %603 : vector<1x8x32xf32> to vector<8x32xf32>
    %605 = vector.shape_cast %601 : vector<8x32xf32> to vector<1x8x32xf32>
    tpu.vector_store %arg14[%602, %c0_166, %c0_167], %605 {strides = array<i32>} : memref<6x8x32xf32, #tpu.memory_space<vmem>>, vector<1x8x32xf32>,
    %c6_i32 = arith.constant 6 : i32
    %c0_168 = arith.constant 0 : index
    %c0_169 = arith.constant 0 : index
    %606 = vector.load %arg16[%c0_168, %c0_169] : memref<8x32xf32, #tpu.memory_space<vmem>>, vector<8x32xf32>
    tpu.vector_store %arg16[%c0_168, %c0_169], %601 {strides = array<i32>} : memref<8x32xf32, #tpu.memory_space<vmem>>, vector<8x32xf32>,
    %c0_170 = arith.constant 0 : index
    %c0_171 = arith.constant 0 : index
    %607 = vector.load %arg17[%c0_170, %c0_171] : memref<8x32xf32, #tpu.memory_space<vmem>>, vector<8x32xf32>
    tpu.vector_store %arg17[%c0_170, %c0_171], %577 {strides = array<i32>} : memref<8x32xf32, #tpu.memory_space<vmem>>, vector<8x32xf32>,
    %c0_172 = arith.constant 0 : index
    %c0_173 = arith.constant 0 : index
    %608 = vector.load %arg15[%c0_172, %c0_173] : memref<8x32xf32, #tpu.memory_space<vmem>>, vector<8x32xf32>
    tpu.vector_store %arg15[%c0_172, %c0_173], %577 {strides = array<i32>} : memref<8x32xf32, #tpu.memory_space<vmem>>, vector<8x32xf32>,
    return
  }
  func.func @transform_0(%arg0: i32) -> (i32, i32, i32) {
    %c0_i32 = arith.constant 0 : i32
    %c0_i32_0 = arith.constant 0 : i32
    %c0_i32_1 = arith.constant 0 : i32
    return %arg0, %c0_i32, %c0_i32_0 : i32, i32, i32
  }
  func.func @transform_1(%arg0: i32) -> (i32, i32) {
    %c0_i32 = arith.constant 0 : i32
    %c0_i32_0 = arith.constant 0 : i32
    %c0_i32_1 = arith.constant 0 : i32
    return %c0_i32, %c0_i32_0 : i32, i32
  }
  func.func @transform_2(%arg0: i32) -> (i32, i32) {
    %c0_i32 = arith.constant 0 : i32
    %c0_i32_0 = arith.constant 0 : i32
    %c0_i32_1 = arith.constant 0 : i32
    return %c0_i32, %c0_i32_0 : i32, i32
  }
  func.func @transform_3(%arg0: i32) -> (i32, i32) {
    %c0_i32 = arith.constant 0 : i32
    %c0_i32_0 = arith.constant 0 : i32
    %c0_i32_1 = arith.constant 0 : i32
    return %c0_i32, %c0_i32_0 : i32, i32
  }
  func.func @transform_4(%arg0: i32) -> (i32, i32) {
    %c0_i32 = arith.constant 0 : i32
    %c0_i32_0 = arith.constant 0 : i32
    %c0_i32_1 = arith.constant 0 : i32
    return %c0_i32, %c0_i32_0 : i32, i32
  }
  func.func @transform_5(%arg0: i32) -> (i32, i32) {
    %c0_i32 = arith.constant 0 : i32
    %c0_i32_0 = arith.constant 0 : i32
    %c0_i32_1 = arith.constant 0 : i32
    return %c0_i32, %c0_i32_0 : i32, i32
  }
  func.func @transform_6(%arg0: i32) -> (i32, i32) {
    %c0_i32 = arith.constant 0 : i32
    %c0_i32_0 = arith.constant 0 : i32
    %c0_i32_1 = arith.constant 0 : i32
    return %c0_i32, %c0_i32_0 : i32, i32
  }
  func.func @transform_7(%arg0: i32) -> (i32, i32) {
    %c0_i32 = arith.constant 0 : i32
    %c0_i32_0 = arith.constant 0 : i32
    %c0_i32_1 = arith.constant 0 : i32
    return %c0_i32, %c0_i32_0 : i32, i32
  }
  func.func @transform_8(%arg0: i32) -> (i32, i32) {
    %c0_i32 = arith.constant 0 : i32
    %c0_i32_0 = arith.constant 0 : i32
    %c0_i32_1 = arith.constant 0 : i32
    return %c0_i32, %c0_i32_0 : i32, i32
  }
  func.func @transform_9(%arg0: i32) -> (i32, i32) {
    %c0_i32 = arith.constant 0 : i32
    %c0_i32_0 = arith.constant 0 : i32
    %c0_i32_1 = arith.constant 0 : i32
    return %c0_i32, %c0_i32_0 : i32, i32
  }
  func.func @transform_10(%arg0: i32) -> (i32, i32) {
    %c0_i32 = arith.constant 0 : i32
    %c0_i32_0 = arith.constant 0 : i32
    %c0_i32_1 = arith.constant 0 : i32
    return %c0_i32, %c0_i32_0 : i32, i32
  }
  func.func @transform_11(%arg0: i32) -> (i32, i32) {
    %c0_i32 = arith.constant 0 : i32
    %c0_i32_0 = arith.constant 0 : i32
    %c0_i32_1 = arith.constant 0 : i32
    return %c0_i32, %c0_i32_0 : i32, i32
  }
  func.func @transform_12(%arg0: i32) -> (i32, i32) {
    %c0_i32 = arith.constant 0 : i32
    %c0_i32_0 = arith.constant 0 : i32
    %c0_i32_1 = arith.constant 0 : i32
    return %c0_i32, %c0_i32_0 : i32, i32
  }
  func.func @transform_13(%arg0: i32) -> (i32, i32, i32) {
    %c0_i32 = arith.constant 0 : i32
    %c0_i32_0 = arith.constant 0 : i32
    %c0_i32_1 = arith.constant 0 : i32
    return %arg0, %c0_i32, %c0_i32_0 : i32, i32, i32
  }
  func.func @transform_14(%arg0: i32) -> (i32, i32) {
    %c0_i32 = arith.constant 0 : i32
    %c0_i32_0 = arith.constant 0 : i32
    %c0_i32_1 = arith.constant 0 : i32
    return %c0_i32, %c0_i32_0 : i32, i32
  }
}

</mosaic_0001>

<llo_original>
// kernel: tpu_custom_call.1
$region0: #{tpu_custom_call.1}
  #allocation0 [shape = 'u32[]', space=smem, size = 0x4, offset = 0x4, fixed_abs, tag = 'smem constant byte address 0x4 - core index']
  #allocation1 [shape = 'u32[72,128]{1,0:T(1,128)}', space=vmem, size = 0x9000, scoped, tag = 'internal scratch']
  #allocation2 [shape = 'f32[8,32]{1,0:T(8,128)}', space=vmem, size = 0x1000, scoped, tag = 'scratch operand']
  #allocation3 [shape = 'f32[8,32]{1,0:T(8,128)}', space=vmem, size = 0x1000, scoped, tag = 'scratch operand']
  %s0 = inlined_call_operand.hbm [shape: f32[6,8,32], index: 0, kind: input, shape index: {}]
  %s1 = inlined_call_operand.hbm [shape: f32[8,32], index: 1, kind: input, shape index: {}]
  %s2 = inlined_call_operand.hbm [shape: f32[8,32], index: 2, kind: input, shape index: {}]
  %s3 = inlined_call_operand.hbm [shape: f32[32,128], index: 3, kind: input, shape index: {}]
  %s4 = inlined_call_operand.vmem [shape: f32[1,128], index: 4, kind: input, shape index: {}]
  %s5 = inlined_call_operand.hbm [shape: f32[32,128], index: 5, kind: input, shape index: {}]
  %s6 = inlined_call_operand.vmem [shape: f32[1,128], index: 6, kind: input, shape index: {}]
  %s7 = inlined_call_operand.vmem [shape: f32[1,128], index: 7, kind: input, shape index: {}]
  %s8 = inlined_call_operand.vmem [shape: f32[1,128], index: 8, kind: input, shape index: {}]
  %s9 = inlined_call_operand.vmem [shape: f32[1,128], index: 9, kind: input, shape index: {}]
  %s10 = inlined_call_operand.vmem [shape: f32[1,128], index: 10, kind: input, shape index: {}]
  %s11 = inlined_call_operand.vmem [shape: f32[1,32], index: 11, kind: input, shape index: {}]
  %s12 = inlined_call_operand.vmem [shape: f32[1,32], index: 12, kind: input, shape index: {}]
  %s13 = inlined_call_operand.hbm [shape: f32[6,8,32], index: 13, kind: output, shape index: {0}]
  %s14 = inlined_call_operand.hbm [shape: f32[8,32], index: 14, kind: output, shape index: {1}]
  %15 = xla_tuple %s13, %s14
  %s16 = sld [smem:[#allocation0]]
  $region94: #{tpu_custom_call.1} parent=0
    _
  %s18 = ssub.s32 1, %s16
  %s19 = scalar_select 0, %s18, %s16
  $region1: #{tpu_custom_call.1} parent=0
    #allocation4 [shape = 'u8[24576]{0}', space=vmem, size = 0x6000, scoped, tag = 'input window, operand 0, single buffered']
    #allocation5 [shape = 's32[1]{0}', space=sflag, size = 0x4, scoped, tag = 'scoped memory for tpu_custom_call.1']
    #allocation6 [shape = 's32[1]{0}', space=sflag, size = 0x4, scoped, tag = 'scoped memory for tpu_custom_call.1']
    #allocation7 [shape = 'u8[4096]{0}', space=vmem, size = 0x1000, scoped, tag = 'input window, operand 1, single buffered']
    #allocation8 [shape = 's32[1]{0}', space=sflag, size = 0x4, scoped, tag = 'scoped memory for tpu_custom_call.1']
    #allocation9 [shape = 'u8[4096]{0}', space=vmem, size = 0x1000, scoped, tag = 'input window, operand 2, single buffered']
    #allocation10 [shape = 'u8[16384]{0}', space=vmem, size = 0x4000, scoped, tag = 'input window, operand 3, single buffered']
    #allocation11 [shape = 's32[1]{0}', space=sflag, size = 0x4, scoped, tag = 'scoped memory for tpu_custom_call.1']
    #allocation12 [shape = 'u8[16384]{0}', space=vmem, size = 0x4000, scoped, tag = 'input window, operand 5, single buffered']
    #allocation13 [shape = 'u8[24576]{0}', space=vmem, size = 0x6000, scoped, tag = 'output window, operand 0, single buffered']
    #allocation14 [shape = 'u8[4096]{0}', space=vmem, size = 0x1000, scoped, tag = 'output window, operand 1, single buffered']
    #allocation15 [shape = 's32[1]{0}', space=sflag, size = 0x4, scoped, tag = 'scoped memory for tpu_custom_call.1']
    %20 = vsyncpa [#allocation5], 0
    %21 = vsyncpa [#allocation8], 0
    %22 = vsyncpa [#allocation11], 0
    %23 = vsyncpa [#allocation6], 0
    %24 = vsyncpa [#allocation15], 0
    // Predicated region
    $region2: #{tpu_custom_call.1} parent=1 // pred_check
      _
    $region3: #{tpu_custom_call.1} parent=1 // pred_check_branch
      %26 = sbr.rel (0) target = $region5
    $region4: #{tpu_custom_call.1} parent=1 // pred_region
      %28 = vsyncadd [#allocation5], 0
      %s29 = sshll.u32 %s0, 4
      %s30 = int_to_ptr.hbm [resolvable:$true] %s29
      %s31 = sshll.u32 [#allocation4], 4
      %s32 = int_to_ptr.vmem [resolvable:$true] %s31
      %37 = dma.hbm_to_vmem [thread:$0]  %s30, 768, %s32, [#allocation5], 128, 128, 8
    $region5: #{tpu_custom_call.1} parent=1 // pred_fallthru
      _
    // Predicated region
    $region6: #{tpu_custom_call.1} parent=1 // pred_check
      _
    $region7: #{tpu_custom_call.1} parent=1 // pred_check_branch
      %39 = sbr.rel (0) target = $region9
    $region8: #{tpu_custom_call.1} parent=1 // pred_region
      %41 = vsyncadd [#allocation8], 0
      %s43 = sshll.u32 %s1, 4
      %s44 = int_to_ptr.hbm [resolvable:$true] %s43
      %s45 = sshll.u32 [#allocation7], 4
      %s46 = int_to_ptr.vmem [resolvable:$true] %s45
      %48 = dma.hbm_to_vmem [thread:$0]  %s44, 128, %s46, [#allocation8]
    $region9: #{tpu_custom_call.1} parent=1 // pred_fallthru
      _
    // Predicated region
    $region10: #{tpu_custom_call.1} parent=1 // pred_check
      _
    $region11: #{tpu_custom_call.1} parent=1 // pred_check_branch
      %50 = sbr.rel (0) target = $region13
    $region12: #{tpu_custom_call.1} parent=1 // pred_region
      %52 = vsyncadd [#allocation8], 0
      %s54 = sshll.u32 %s2, 4
      %s55 = int_to_ptr.hbm [resolvable:$true] %s54
      %s56 = sshll.u32 [#allocation9], 4
      %s57 = int_to_ptr.vmem [resolvable:$true] %s56
      %59 = dma.hbm_to_vmem [thread:$0]  %s55, 128, %s57, [#allocation8]
    $region13: #{tpu_custom_call.1} parent=1 // pred_fallthru
      _
    // Predicated region
    $region14: #{tpu_custom_call.1} parent=1 // pred_check
      _
    $region15: #{tpu_custom_call.1} parent=1 // pred_check_branch
      %61 = sbr.rel (0) target = $region17
    $region16: #{tpu_custom_call.1} parent=1 // pred_region
      %63 = vsyncadd [#allocation11], 0
      %s64 = sshll.u32 %s3, 4
      %s65 = int_to_ptr.hbm [resolvable:$true] %s64
      %s66 = sshll.u32 [#allocation10], 4
      %s67 = int_to_ptr.vmem [resolvable:$true] %s66
      %72 = dma.hbm_to_vmem [thread:$0]  %s65, 512, %s67, [#allocation11], 128, 128, 8
    $region17: #{tpu_custom_call.1} parent=1 // pred_fallthru
      _
    // Predicated region
    $region18: #{tpu_custom_call.1} parent=1 // pred_check
      _
    $region19: #{tpu_custom_call.1} parent=1 // pred_check_branch
      %74 = sbr.rel (0) target = $region21
    $region20: #{tpu_custom_call.1} parent=1 // pred_region
      _
    $region21: #{tpu_custom_call.1} parent=1 // pred_fallthru
      _
    // Predicated region
    $region22: #{tpu_custom_call.1} parent=1 // pred_check
      _
    $region23: #{tpu_custom_call.1} parent=1 // pred_check_branch
      %76 = sbr.rel (0) target = $region25
    $region24: #{tpu_custom_call.1} parent=1 // pred_region
      %78 = vsyncadd [#allocation11], 0
      %s79 = sshll.u32 %s5, 4
      %s80 = int_to_ptr.hbm [resolvable:$true] %s79
      %s81 = sshll.u32 [#allocation12], 4
      %s82 = int_to_ptr.vmem [resolvable:$true] %s81
      %87 = dma.hbm_to_vmem [thread:$0]  %s80, 512, %s82, [#allocation11], 128, 128, 8
    $region25: #{tpu_custom_call.1} parent=1 // pred_fallthru
      _
    // Predicated region
    $region26: #{tpu_custom_call.1} parent=1 // pred_check
      _
    $region27: #{tpu_custom_call.1} parent=1 // pred_check_branch
      %89 = sbr.rel (0) target = $region29
    $region28: #{tpu_custom_call.1} parent=1 // pred_region
      _
    $region29: #{tpu_custom_call.1} parent=1 // pred_fallthru
      _
    // Predicated region
    $region30: #{tpu_custom_call.1} parent=1 // pred_check
      _
    $region31: #{tpu_custom_call.1} parent=1 // pred_check_branch
      %91 = sbr.rel (0) target = $region33
    $region32: #{tpu_custom_call.1} parent=1 // pred_region
      _
    $region33: #{tpu_custom_call.1} parent=1 // pred_fallthru
      _
    // Predicated region
    $region34: #{tpu_custom_call.1} parent=1 // pred_check
      _
    $region35: #{tpu_custom_call.1} parent=1 // pred_check_branch
      %93 = sbr.rel (0) target = $region37
    $region36: #{tpu_custom_call.1} parent=1 // pred_region
      _
    $region37: #{tpu_custom_call.1} parent=1 // pred_fallthru
      _
    // Predicated region
    $region38: #{tpu_custom_call.1} parent=1 // pred_check
      _
    $region39: #{tpu_custom_call.1} parent=1 // pred_check_branch
      %95 = sbr.rel (0) target = $region41
    $region40: #{tpu_custom_call.1} parent=1 // pred_region
      _
    $region41: #{tpu_custom_call.1} parent=1 // pred_fallthru
      _
    // Predicated region
    $region42: #{tpu_custom_call.1} parent=1 // pred_check
      _
    $region43: #{tpu_custom_call.1} parent=1 // pred_check_branch
      %97 = sbr.rel (0) target = $region45
    $region44: #{tpu_custom_call.1} parent=1 // pred_region
      _
    $region45: #{tpu_custom_call.1} parent=1 // pred_fallthru
      _
    // Predicated region
    $region46: #{tpu_custom_call.1} parent=1 // pred_check
      _
    $region47: #{tpu_custom_call.1} parent=1 // pred_check_branch
      %99 = sbr.rel (0) target = $region49
    $region48: #{tpu_custom_call.1} parent=1 // pred_region
      _
    $region49: #{tpu_custom_call.1} parent=1 // pred_fallthru
      _
    // Predicated region
    $region50: #{tpu_custom_call.1} parent=1 // pred_check
      _
    $region51: #{tpu_custom_call.1} parent=1 // pred_check_branch
      %101 = sbr.rel (0) target = $region53
    $region52: #{tpu_custom_call.1} parent=1 // pred_region
      _
    $region53: #{tpu_custom_call.1} parent=1 // pred_fallthru
      _
    // Predicated region
    $region54: #{tpu_custom_call.1} parent=1 // pred_check
      _
    $region55: #{tpu_custom_call.1} parent=1 // pred_check_branch
      %103 = sbr.rel (0) target = $region57
    $region56: #{tpu_custom_call.1} parent=1 // pred_region
      %105 = dma.done [#allocation5], 768
    $region57: #{tpu_custom_call.1} parent=1 // pred_fallthru
      _
    // Predicated region
    $region58: #{tpu_custom_call.1} parent=1 // pred_check
      _
    $region59: #{tpu_custom_call.1} parent=1 // pred_check_branch
      %107 = sbr.rel (0) target = $region61
    $region60: #{tpu_custom_call.1} parent=1 // pred_region
      %109 = dma.done [#allocation8], 128
    $region61: #{tpu_custom_call.1} parent=1 // pred_fallthru
      _
    // Predicated region
    $region62: #{tpu_custom_call.1} parent=1 // pred_check
      _
    $region63: #{tpu_custom_call.1} parent=1 // pred_check_branch
      %111 = sbr.rel (0) target = $region65
    $region64: #{tpu_custom_call.1} parent=1 // pred_region
      %113 = dma.done [#allocation8], 128
    $region65: #{tpu_custom_call.1} parent=1 // pred_fallthru
      _
    // Predicated region
    $region66: #{tpu_custom_call.1} parent=1 // pred_check
      _
    $region67: #{tpu_custom_call.1} parent=1 // pred_check_branch
      %115 = sbr.rel (0) target = $region69
    $region68: #{tpu_custom_call.1} parent=1 // pred_region
      %117 = dma.done [#allocation11], 512
    $region69: #{tpu_custom_call.1} parent=1 // pred_fallthru
      _
    // Predicated region
    $region70: #{tpu_custom_call.1} parent=1 // pred_check
      _
    $region71: #{tpu_custom_call.1} parent=1 // pred_check_branch
      %119 = sbr.rel (0) target = $region73
    $region72: #{tpu_custom_call.1} parent=1 // pred_region
      %121 = dma.done [#allocation11], 512
    $region73: #{tpu_custom_call.1} parent=1 // pred_fallthru
      _
    %p122 = scmp.eq.s32.totalorder 0, 0
    // Predicated region
    $region74: #{tpu_custom_call.1} parent=1 // pred_check
      %p123 = pneg %p122
    $region75: #{tpu_custom_call.1} parent=1 // pred_check_branch
      %125 = sbr.rel (%p123) target = $region77
    $region76: #{tpu_custom_call.1} parent=1 // pred_region
      %v126 = vld [vmem:[#allocation7] sm:$0xff]
      %vm127 = vcmask 261120
      %128 = vst.msk [vmem:[#allocation2] sm:$0xff] %vm127, %v126
      %v129 = vld [vmem:[#allocation9] sm:$0xff]
      %130 = vst.msk [vmem:[#allocation3] sm:$0xff] %vm127, %v129
    $region77: #{tpu_custom_call.1} parent=1 // pred_fallthru
      _
    %v131 = vld [vmem:[#allocation10] sm:$0xff]
    %v132 = vld [vmem:[#allocation10 + $0x8] sm:$0xff]
    %v133 = vld [vmem:[#allocation10 + $0x10] sm:$0xff]
    %v134 = vld [vmem:[#allocation10 + $0x18] sm:$0xff]
    %v135 = vld [vmem:[#allocation12] sm:$0xff]
    %v136 = vld [vmem:[#allocation12 + $0x8] sm:$0xff]
    %v137 = vld [vmem:[#allocation12 + $0x10] sm:$0xff]
    %v138 = vld [vmem:[#allocation12 + $0x18] sm:$0xff]
    %v139 = vld [vmem:[%s4] sm:$0x1]
    %v140 = vld [vmem:[%s6] sm:$0x1]
    %v141 = vld [vmem:[%s7] sm:$0x1]
    %v142 = vld [vmem:[%s8] sm:$0x1]
    %v143 = vld [vmem:[%s9] sm:$0x1]
    %v144 = vld [vmem:[%s10] sm:$0x1]
    %v145 = vld [vmem:[%s11] sm:$0x1]
    %v146 = vld [vmem:[%s12] sm:$0x1]
    %v147 = vlaneseq
    %v148 = vand.u32 %v147, 127
    %vm149 = vcmp.lt.s32.totalorder %v148, 96
    %v150 = vld [vmem:[#allocation2] sm:$0xff]
    %v151 = vld [vmem:[#allocation3] sm:$0xff]
    %v152 = vld [vmem:[#allocation4] sm:$0xff]
    %v154 = vperm.slane %v139, 0
    %vm156 = vcmask 261120
    %v158 = vsel %vm156, %v152, 0
    %160 = vmatpush.msra.mxu0 0.0
    %161 = vmatpush.msra.mxu0 0.0
    %162 = vmatpush.msra.mxu0 0.0
    %163 = vmatpush.msra.mxu0 0.0
    %164 = vmatpush.msra.mxu0 0.0
    %165 = vmatpush.msra.mxu0 0.0
    %166 = vmatpush.msra.mxu0 0.0
    %167 = vmatpush.msra.mxu0 0.0
    %168 = vmatpush.msra.mxu0 0.0
    %169 = vmatpush.msra.mxu0 0.0
    %170 = vmatpush.msra.mxu0 0.0
    %171 = vmatpush.msra.mxu0 0.0
    %172 = vmatpush.msra.mxu0 %v134
    %173 = vmatpush.msra.mxu0 %v133
    %174 = vmatpush.msra.mxu0 %v132
    %175 = vmatpush.msra.mxu0 %v131
    %176 = vmatmul.f32.gmra.mxu0 %v158
    %v177 = vpop.f32.mrf.mxu0
    %v178 = vadd.f32 %v154, %v177
    %179 = vdwg.mxu0
    %v181 = vperm.slane %v140, 0
    %v184 = vsel %vm156, %v150, 0
    %186 = vmatpush.msra.mxu0 0.0
    %187 = vmatpush.msra.mxu0 0.0
    %188 = vmatpush.msra.mxu0 0.0
    %189 = vmatpush.msra.mxu0 0.0
    %190 = vmatpush.msra.mxu0 0.0
    %191 = vmatpush.msra.mxu0 0.0
    %192 = vmatpush.msra.mxu0 0.0
    %193 = vmatpush.msra.mxu0 0.0
    %194 = vmatpush.msra.mxu0 0.0
    %195 = vmatpush.msra.mxu0 0.0
    %196 = vmatpush.msra.mxu0 0.0
    %197 = vmatpush.msra.mxu0 0.0
    %198 = vmatpush.msra.mxu0 %v138
    %199 = vmatpush.msra.mxu0 %v137
    %200 = vmatpush.msra.mxu0 %v136
    %201 = vmatpush.msra.mxu0 %v135
    %202 = vmatmul.f32.gmra.mxu0 %v184
    %v203 = vpop.f32.mrf.mxu0
    %v204 = vadd.f32 %v181, %v203
    %205 = vdwg.mxu0
    %206 = vadd.xlane.f32.xlu0 %v178
    %v207 = vpop.xlane.xlu0 %206
    %v208 = vrcp.pop 128.0
    %v209 = vmul.f32 128.0, %v208
    %v210 = vsub.f32 1.0, %v209
    %v211 = vmul.f32 %v208, %v210
    %v212 = vadd.f32 %v208, %v211
    %vm213 = vweird.f32 %v208
    %v214 = vsel %vm213, %v208, %v212
    %v215 = vmul.f32 %v207, %v214
    %v216 = vmul.f32 %v178, %v178
    %217 = vadd.xlane.f32.xlu0 %v216
    %v218 = vpop.xlane.xlu0 %217
    %v219 = vmul.f32 %v218, %v214
    %v220 = vmul.f32 %v215, %v215
    %v221 = vsub.f32 %v219, %v220
    %v222 = vsub.f32 %v178, %v215
    %v224 = vperm.slane %v141, 0
    %v226 = vmul.f32 %v224, %v222
    %v227 = vadd.f32 %v221, 1e-05
    %v228 = vrsqrt.pop %v227
    %v229 = vmul.f32 %v228, %v227
    %v230 = vmul.f32 %v229, %v228
    %v231 = vmul.f32 0.5, %v230
    %v232 = vsub.f32 1.5, %v231
    %v233 = vmul.f32 %v228, %v232
    %vm234 = vweird.f32 %v227
    %vm235 = vweird.f32 %v228
    %vm236 = vmor %vm234, %vm235
    %v237 = vsel %vm236, %v228, %v233
    %v238 = vmul.f32 %v226, %v237
    %v240 = vperm.slane %v142, 0
    %v242 = vadd.f32 %v240, %v238
    %243 = vadd.xlane.f32.xlu0 %v204
    %v244 = vpop.xlane.xlu0 %243
    %v245 = vmul.f32 %v244, %v214
    %v246 = vmul.f32 %v204, %v204
    %247 = vadd.xlane.f32.xlu0 %v246
    %v248 = vpop.xlane.xlu0 %247
    %v249 = vmul.f32 %v248, %v214
    %v250 = vmul.f32 %v245, %v245
    %v251 = vsub.f32 %v249, %v250
    %v252 = vsub.f32 %v204, %v245
    %v254 = vperm.slane %v143, 0
    %v256 = vmul.f32 %v254, %v252
    %v257 = vadd.f32 %v251, 1e-05
    %v258 = vrsqrt.pop %v257
    %v259 = vmul.f32 %v258, %v257
    %v260 = vmul.f32 %v259, %v258
    %v261 = vmul.f32 0.5, %v260
    %v262 = vsub.f32 1.5, %v261
    %v263 = vmul.f32 %v258, %v262
    %vm264 = vweird.f32 %v257
    %vm265 = vweird.f32 %v258
    %vm266 = vmor %vm264, %vm265
    %v267 = vsel %vm266, %v258, %v263
    %v268 = vmul.f32 %v256, %v267
    %v270 = vperm.slane %v144, 0
    %v272 = vadd.f32 %v270, %v268
    %v273 = vadd.f32 %v242, %v272
    %v274 = vmul.f32 %v273, 0.5
    %v275 = vsel %vm149, %v274, %v273
    %v276 = vtanh.pop %v275
    %v277 = vmul.f32 %v276, 0.5
    %v278 = vadd.f32 %v277, 0.5
    %v279 = vsel %vm149, %v278, %v276
    %281 = vrot.lane.b32.xlu0 %v279, 96
    %v282 = vpop.permute.xlu0 %281
    %v284 = vmul.f32 %v151, %v282
    %v285 = vmul.f32 %v279, %v282
    %287 = vrot.lane.b32.xlu0 %v285, 32
    %v288 = vpop.permute.xlu0 %287
    %v290 = vadd.f32 %v284, %v288
    %v291 = vsel %vm156, %v290, 0.0
    %292 = vadd.xlane.f32.xlu0 %v291
    %v293 = vpop.xlane.xlu0 %292
    %v294 = vrcp.pop 32.0
    %v295 = vmul.f32 32.0, %v294
    %v296 = vsub.f32 1.0, %v295
    %v297 = vmul.f32 %v294, %v296
    %v298 = vadd.f32 %v294, %v297
    %vm299 = vweird.f32 %v294
    %v300 = vsel %vm299, %v294, %v298
    %v301 = vmul.f32 %v293, %v300
    %v302 = vmul.f32 %v290, %v290
    %v303 = vsel %vm156, %v302, 0.0
    %304 = vadd.xlane.f32.xlu0 %v303
    %v305 = vpop.xlane.xlu0 %304
    %v306 = vmul.f32 %v305, %v300
    %v307 = vmul.f32 %v301, %v301
    %v308 = vsub.f32 %v306, %v307
    %v309 = vsub.f32 %v290, %v301
    %v311 = vperm.slane %v145, 0
    %v313 = vmul.f32 %v311, %v309
    %v314 = vadd.f32 %v308, 1e-05
    %v315 = vrsqrt.pop %v314
    %v316 = vmul.f32 %v315, %v314
    %v317 = vmul.f32 %v316, %v315
    %v318 = vmul.f32 0.5, %v317
    %v319 = vsub.f32 1.5, %v318
    %v320 = vmul.f32 %v315, %v319
    %vm321 = vweird.f32 %v314
    %vm322 = vweird.f32 %v315
    %vm323 = vmor %vm321, %vm322
    %v324 = vsel %vm323, %v315, %v320
    %v325 = vmul.f32 %v313, %v324
    %v327 = vperm.slane %v146, 0
    %v329 = vadd.f32 %v327, %v325
    %v330 = vtanh.pop %v329
    %332 = vrot.lane.b32.xlu0 %v330, 64
    %v333 = vpop.permute.xlu0 %332
    %v335 = vmul.f32 %v279, %v333
    %337 = vrot.lane.b32.xlu0 %v335, 64
    %v338 = vpop.permute.xlu0 %337
    %340 = vst.msk [vmem:[#allocation13] sm:$0xff] %vm156, %v338
    %s341 = scalar_lea.vmem [#allocation4], 8
    %v342 = vld [vmem:[%s341] sm:$0xff]
    %v344 = vsel %vm156, %v342, 0
    %346 = vmatpush.msra.mxu0 0.0
    %347 = vmatpush.msra.mxu0 0.0
    %348 = vmatpush.msra.mxu0 0.0
    %349 = vmatpush.msra.mxu0 0.0
    %350 = vmatpush.msra.mxu0 0.0
    %351 = vmatpush.msra.mxu0 0.0
    %352 = vmatpush.msra.mxu0 0.0
    %353 = vmatpush.msra.mxu0 0.0
    %354 = vmatpush.msra.mxu0 0.0
    %355 = vmatpush.msra.mxu0 0.0
    %356 = vmatpush.msra.mxu0 0.0
    %357 = vmatpush.msra.mxu0 0.0
    %358 = vmatpush.msra.mxu0 %v134
    %359 = vmatpush.msra.mxu0 %v133
    %360 = vmatpush.msra.mxu0 %v132
    %361 = vmatpush.msra.mxu0 %v131
    %362 = vmatmul.f32.gmra.mxu0 %v344
    %v363 = vpop.f32.mrf.mxu0
    %v364 = vadd.f32 %v154, %v363
    %365 = vdwg.mxu0
    %v366 = vsel %vm156, %v338, 0
    %368 = vmatpush.msra.mxu0 0.0
    %369 = vmatpush.msra.mxu0 0.0
    %370 = vmatpush.msra.mxu0 0.0
    %371 = vmatpush.msra.mxu0 0.0
    %372 = vmatpush.msra.mxu0 0.0
    %373 = vmatpush.msra.mxu0 0.0
    %374 = vmatpush.msra.mxu0 0.0
    %375 = vmatpush.msra.mxu0 0.0
    %376 = vmatpush.msra.mxu0 0.0
    %377 = vmatpush.msra.mxu0 0.0
    %378 = vmatpush.msra.mxu0 0.0
    %379 = vmatpush.msra.mxu0 0.0
    %380 = vmatpush.msra.mxu0 %v138
    %381 = vmatpush.msra.mxu0 %v137
    %382 = vmatpush.msra.mxu0 %v136
    %383 = vmatpush.msra.mxu0 %v135
    %384 = vmatmul.f32.gmra.mxu0 %v366
    %v385 = vpop.f32.mrf.mxu0
    %v386 = vadd.f32 %v181, %v385
    %387 = vdwg.mxu0
    %388 = vadd.xlane.f32.xlu0 %v364
    %v389 = vpop.xlane.xlu0 %388
    %v390 = vmul.f32 %v389, %v214
    %v391 = vmul.f32 %v364, %v364
    %392 = vadd.xlane.f32.xlu0 %v391
    %v393 = vpop.xlane.xlu0 %392
    %v394 = vmul.f32 %v393, %v214
    %v395 = vmul.f32 %v390, %v390
    %v396 = vsub.f32 %v394, %v395
    %v397 = vsub.f32 %v364, %v390
    %v398 = vmul.f32 %v224, %v397
    %v399 = vadd.f32 %v396, 1e-05
    %v400 = vrsqrt.pop %v399
    %v401 = vmul.f32 %v400, %v399
    %v402 = vmul.f32 %v401, %v400
    %v403 = vmul.f32 0.5, %v402
    %v404 = vsub.f32 1.5, %v403
    %v405 = vmul.f32 %v400, %v404
    %vm406 = vweird.f32 %v399
    %vm407 = vweird.f32 %v400
    %vm408 = vmor %vm406, %vm407
    %v409 = vsel %vm408, %v400, %v405
    %v410 = vmul.f32 %v398, %v409
    %v411 = vadd.f32 %v240, %v410
    %412 = vadd.xlane.f32.xlu0 %v386
    %v413 = vpop.xlane.xlu0 %412
    %v414 = vmul.f32 %v413, %v214
    %v415 = vmul.f32 %v386, %v386
    %416 = vadd.xlane.f32.xlu0 %v415
    %v417 = vpop.xlane.xlu0 %416
    %v418 = vmul.f32 %v417, %v214
    %v419 = vmul.f32 %v414, %v414
    %v420 = vsub.f32 %v418, %v419
    %v421 = vsub.f32 %v386, %v414
    %v422 = vmul.f32 %v254, %v421
    %v423 = vadd.f32 %v420, 1e-05
    %v424 = vrsqrt.pop %v423
    %v425 = vmul.f32 %v424, %v423
    %v426 = vmul.f32 %v425, %v424
    %v427 = vmul.f32 0.5, %v426
    %v428 = vsub.f32 1.5, %v427
    %v429 = vmul.f32 %v424, %v428
    %vm430 = vweird.f32 %v423
    %vm431 = vweird.f32 %v424
    %vm432 = vmor %vm430, %vm431
    %v433 = vsel %vm432, %v424, %v429
    %v434 = vmul.f32 %v422, %v433
    %v435 = vadd.f32 %v270, %v434
    %v436 = vadd.f32 %v411, %v435
    %v437 = vmul.f32 %v436, 0.5
    %v438 = vsel %vm149, %v437, %v436
    %v439 = vtanh.pop %v438
    %v440 = vmul.f32 %v439, 0.5
    %v441 = vadd.f32 %v440, 0.5
    %v442 = vsel %vm149, %v441, %v439
    %444 = vrot.lane.b32.xlu0 %v442, 96
    %v445 = vpop.permute.xlu0 %444
    %v447 = vmul.f32 %v290, %v445
    %v448 = vmul.f32 %v442, %v445
    %450 = vrot.lane.b32.xlu0 %v448, 32
    %v451 = vpop.permute.xlu0 %450
    %v453 = vadd.f32 %v447, %v451
    %v454 = vsel %vm156, %v453, 0.0
    %455 = vadd.xlane.f32.xlu0 %v454
    %v456 = vpop.xlane.xlu0 %455
    %v457 = vmul.f32 %v456, %v300
    %v458 = vmul.f32 %v453, %v453
    %v459 = vsel %vm156, %v458, 0.0
    %460 = vadd.xlane.f32.xlu0 %v459
    %v461 = vpop.xlane.xlu0 %460
    %v462 = vmul.f32 %v461, %v300
    %v463 = vmul.f32 %v457, %v457
    %v464 = vsub.f32 %v462, %v463
    %v465 = vsub.f32 %v453, %v457
    %v466 = vmul.f32 %v311, %v465
    %v467 = vadd.f32 %v464, 1e-05
    %v468 = vrsqrt.pop %v467
    %v469 = vmul.f32 %v468, %v467
    %v470 = vmul.f32 %v469, %v468
    %v471 = vmul.f32 0.5, %v470
    %v472 = vsub.f32 1.5, %v471
    %v473 = vmul.f32 %v468, %v472
    %vm474 = vweird.f32 %v467
    %vm475 = vweird.f32 %v468
    %vm476 = vmor %vm474, %vm475
    %v477 = vsel %vm476, %v468, %v473
    %v478 = vmul.f32 %v466, %v477
    %v479 = vadd.f32 %v327, %v478
    %v480 = vtanh.pop %v479
    %482 = vrot.lane.b32.xlu0 %v480, 64
    %v483 = vpop.permute.xlu0 %482
    %v485 = vmul.f32 %v442, %v483
    %487 = vrot.lane.b32.xlu0 %v485, 64
    %v488 = vpop.permute.xlu0 %487
    %s490 = scalar_lea.vmem [#allocation13], 8
    %491 = vst.msk [vmem:[%s490] sm:$0xff] %vm156, %v488
    %s492 = scalar_lea.vmem [#allocation4], 16
    %v493 = vld [vmem:[%s492] sm:$0xff]
    %v495 = vsel %vm156, %v493, 0
    %497 = vmatpush.msra.mxu0 0.0
    %498 = vmatpush.msra.mxu0 0.0
    %499 = vmatpush.msra.mxu0 0.0
    %500 = vmatpush.msra.mxu0 0.0
    %501 = vmatpush.msra.mxu0 0.0
    %502 = vmatpush.msra.mxu0 0.0
    %503 = vmatpush.msra.mxu0 0.0
    %504 = vmatpush.msra.mxu0 0.0
    %505 = vmatpush.msra.mxu0 0.0
    %506 = vmatpush.msra.mxu0 0.0
    %507 = vmatpush.msra.mxu0 0.0
    %508 = vmatpush.msra.mxu0 0.0
    %509 = vmatpush.msra.mxu0 %v134
    %510 = vmatpush.msra.mxu0 %v133
    %511 = vmatpush.msra.mxu0 %v132
    %512 = vmatpush.msra.mxu0 %v131
    %513 = vmatmul.f32.gmra.mxu0 %v495
    %v514 = vpop.f32.mrf.mxu0
    %v515 = vadd.f32 %v154, %v514
    %516 = vdwg.mxu0
    %v517 = vsel %vm156, %v488, 0
    %519 = vmatpush.msra.mxu0 0.0
    %520 = vmatpush.msra.mxu0 0.0
    %521 = vmatpush.msra.mxu0 0.0
    %522 = vmatpush.msra.mxu0 0.0
    %523 = vmatpush.msra.mxu0 0.0
    %524 = vmatpush.msra.mxu0 0.0
    %525 = vmatpush.msra.mxu0 0.0
    %526 = vmatpush.msra.mxu0 0.0
    %527 = vmatpush.msra.mxu0 0.0
    %528 = vmatpush.msra.mxu0 0.0
    %529 = vmatpush.msra.mxu0 0.0
    %530 = vmatpush.msra.mxu0 0.0
    %531 = vmatpush.msra.mxu0 %v138
    %532 = vmatpush.msra.mxu0 %v137
    %533 = vmatpush.msra.mxu0 %v136
    %534 = vmatpush.msra.mxu0 %v135
    %535 = vmatmul.f32.gmra.mxu0 %v517
    %v536 = vpop.f32.mrf.mxu0
    %v537 = vadd.f32 %v181, %v536
    %538 = vdwg.mxu0
    %539 = vadd.xlane.f32.xlu0 %v515
    %v540 = vpop.xlane.xlu0 %539
    %v541 = vmul.f32 %v540, %v214
    %v542 = vmul.f32 %v515, %v515
    %543 = vadd.xlane.f32.xlu0 %v542
    %v544 = vpop.xlane.xlu0 %543
    %v545 = vmul.f32 %v544, %v214
    %v546 = vmul.f32 %v541, %v541
    %v547 = vsub.f32 %v545, %v546
    %v548 = vsub.f32 %v515, %v541
    %v549 = vmul.f32 %v224, %v548
    %v550 = vadd.f32 %v547, 1e-05
    %v551 = vrsqrt.pop %v550
    %v552 = vmul.f32 %v551, %v550
    %v553 = vmul.f32 %v552, %v551
    %v554 = vmul.f32 0.5, %v553
    %v555 = vsub.f32 1.5, %v554
    %v556 = vmul.f32 %v551, %v555
    %vm557 = vweird.f32 %v550
    %vm558 = vweird.f32 %v551
    %vm559 = vmor %vm557, %vm558
    %v560 = vsel %vm559, %v551, %v556
    %v561 = vmul.f32 %v549, %v560
    %v562 = vadd.f32 %v240, %v561
    %563 = vadd.xlane.f32.xlu0 %v537
    %v564 = vpop.xlane.xlu0 %563
    %v565 = vmul.f32 %v564, %v214
    %v566 = vmul.f32 %v537, %v537
    %567 = vadd.xlane.f32.xlu0 %v566
    %v568 = vpop.xlane.xlu0 %567
    %v569 = vmul.f32 %v568, %v214
    %v570 = vmul.f32 %v565, %v565
    %v571 = vsub.f32 %v569, %v570
    %v572 = vsub.f32 %v537, %v565
    %v573 = vmul.f32 %v254, %v572
    %v574 = vadd.f32 %v571, 1e-05
    %v575 = vrsqrt.pop %v574
    %v576 = vmul.f32 %v575, %v574
    %v577 = vmul.f32 %v576, %v575
    %v578 = vmul.f32 0.5, %v577
    %v579 = vsub.f32 1.5, %v578
    %v580 = vmul.f32 %v575, %v579
    %vm581 = vweird.f32 %v574
    %vm582 = vweird.f32 %v575
    %vm583 = vmor %vm581, %vm582
    %v584 = vsel %vm583, %v575, %v580
    %v585 = vmul.f32 %v573, %v584
    %v586 = vadd.f32 %v270, %v585
    %v587 = vadd.f32 %v562, %v586
    %v588 = vmul.f32 %v587, 0.5
    %v589 = vsel %vm149, %v588, %v587
    %v590 = vtanh.pop %v589
    %v591 = vmul.f32 %v590, 0.5
    %v592 = vadd.f32 %v591, 0.5
    %v593 = vsel %vm149, %v592, %v590
    %595 = vrot.lane.b32.xlu0 %v593, 96
    %v596 = vpop.permute.xlu0 %595
    %v598 = vmul.f32 %v453, %v596
    %v599 = vmul.f32 %v593, %v596
    %601 = vrot.lane.b32.xlu0 %v599, 32
    %v602 = vpop.permute.xlu0 %601
    %v604 = vadd.f32 %v598, %v602
    %v605 = vsel %vm156, %v604, 0.0
    %606 = vadd.xlane.f32.xlu0 %v605
    %v607 = vpop.xlane.xlu0 %606
    %v608 = vmul.f32 %v607, %v300
    %v609 = vmul.f32 %v604, %v604
    %v610 = vsel %vm156, %v609, 0.0
    %611 = vadd.xlane.f32.xlu0 %v610
    %v612 = vpop.xlane.xlu0 %611
    %v613 = vmul.f32 %v612, %v300
    %v614 = vmul.f32 %v608, %v608
    %v615 = vsub.f32 %v613, %v614
    %v616 = vsub.f32 %v604, %v608
    %v617 = vmul.f32 %v311, %v616
    %v618 = vadd.f32 %v615, 1e-05
    %v619 = vrsqrt.pop %v618
    %v620 = vmul.f32 %v619, %v618
    %v621 = vmul.f32 %v620, %v619
    %v622 = vmul.f32 0.5, %v621
    %v623 = vsub.f32 1.5, %v622
    %v624 = vmul.f32 %v619, %v623
    %vm625 = vweird.f32 %v618
    %vm626 = vweird.f32 %v619
    %vm627 = vmor %vm625, %vm626
    %v628 = vsel %vm627, %v619, %v624
    %v629 = vmul.f32 %v617, %v628
    %v630 = vadd.f32 %v327, %v629
    %v631 = vtanh.pop %v630
    %633 = vrot.lane.b32.xlu0 %v631, 64
    %v634 = vpop.permute.xlu0 %633
    %v636 = vmul.f32 %v593, %v634
    %638 = vrot.lane.b32.xlu0 %v636, 64
    %v639 = vpop.permute.xlu0 %638
    %s641 = scalar_lea.vmem [#allocation13], 16
    %642 = vst.msk [vmem:[%s641] sm:$0xff] %vm156, %v639
    %s643 = scalar_lea.vmem [#allocation4], 24
    %v644 = vld [vmem:[%s643] sm:$0xff]
    %v646 = vsel %vm156, %v644, 0
    %648 = vmatpush.msra.mxu0 0.0
    %649 = vmatpush.msra.mxu0 0.0
    %650 = vmatpush.msra.mxu0 0.0
    %651 = vmatpush.msra.mxu0 0.0
    %652 = vmatpush.msra.mxu0 0.0
    %653 = vmatpush.msra.mxu0 0.0
    %654 = vmatpush.msra.mxu0 0.0
    %655 = vmatpush.msra.mxu0 0.0
    %656 = vmatpush.msra.mxu0 0.0
    %657 = vmatpush.msra.mxu0 0.0
    %658 = vmatpush.msra.mxu0 0.0
    %659 = vmatpush.msra.mxu0 0.0
    %660 = vmatpush.msra.mxu0 %v134
    %661 = vmatpush.msra.mxu0 %v133
    %662 = vmatpush.msra.mxu0 %v132
    %663 = vmatpush.msra.mxu0 %v131
    %664 = vmatmul.f32.gmra.mxu0 %v646
    %v665 = vpop.f32.mrf.mxu0
    %v666 = vadd.f32 %v154, %v665
    %667 = vdwg.mxu0
    %v668 = vsel %vm156, %v639, 0
    %670 = vmatpush.msra.mxu0 0.0
    %671 = vmatpush.msra.mxu0 0.0
    %672 = vmatpush.msra.mxu0 0.0
    %673 = vmatpush.msra.mxu0 0.0
    %674 = vmatpush.msra.mxu0 0.0
    %675 = vmatpush.msra.mxu0 0.0
    %676 = vmatpush.msra.mxu0 0.0
    %677 = vmatpush.msra.mxu0 0.0
    %678 = vmatpush.msra.mxu0 0.0
    %679 = vmatpush.msra.mxu0 0.0
    %680 = vmatpush.msra.mxu0 0.0
    %681 = vmatpush.msra.mxu0 0.0
    %682 = vmatpush.msra.mxu0 %v138
    %683 = vmatpush.msra.mxu0 %v137
    %684 = vmatpush.msra.mxu0 %v136
    %685 = vmatpush.msra.mxu0 %v135
    %686 = vmatmul.f32.gmra.mxu0 %v668
    %v687 = vpop.f32.mrf.mxu0
    %v688 = vadd.f32 %v181, %v687
    %689 = vdwg.mxu0
    %690 = vadd.xlane.f32.xlu0 %v666
    %v691 = vpop.xlane.xlu0 %690
    %v692 = vmul.f32 %v691, %v214
    %v693 = vmul.f32 %v666, %v666
    %694 = vadd.xlane.f32.xlu0 %v693
    %v695 = vpop.xlane.xlu0 %694
    %v696 = vmul.f32 %v695, %v214
    %v697 = vmul.f32 %v692, %v692
    %v698 = vsub.f32 %v696, %v697
    %v699 = vsub.f32 %v666, %v692
    %v700 = vmul.f32 %v224, %v699
    %v701 = vadd.f32 %v698, 1e-05
    %v702 = vrsqrt.pop %v701
    %v703 = vmul.f32 %v702, %v701
    %v704 = vmul.f32 %v703, %v702
    %v705 = vmul.f32 0.5, %v704
    %v706 = vsub.f32 1.5, %v705
    %v707 = vmul.f32 %v702, %v706
    %vm708 = vweird.f32 %v701
    %vm709 = vweird.f32 %v702
    %vm710 = vmor %vm708, %vm709
    %v711 = vsel %vm710, %v702, %v707
    %v712 = vmul.f32 %v700, %v711
    %v713 = vadd.f32 %v240, %v712
    %714 = vadd.xlane.f32.xlu0 %v688
    %v715 = vpop.xlane.xlu0 %714
    %v716 = vmul.f32 %v715, %v214
    %v717 = vmul.f32 %v688, %v688
    %718 = vadd.xlane.f32.xlu0 %v717
    %v719 = vpop.xlane.xlu0 %718
    %v720 = vmul.f32 %v719, %v214
    %v721 = vmul.f32 %v716, %v716
    %v722 = vsub.f32 %v720, %v721
    %v723 = vsub.f32 %v688, %v716
    %v724 = vmul.f32 %v254, %v723
    %v725 = vadd.f32 %v722, 1e-05
    %v726 = vrsqrt.pop %v725
    %v727 = vmul.f32 %v726, %v725
    %v728 = vmul.f32 %v727, %v726
    %v729 = vmul.f32 0.5, %v728
    %v730 = vsub.f32 1.5, %v729
    %v731 = vmul.f32 %v726, %v730
    %vm732 = vweird.f32 %v725
    %vm733 = vweird.f32 %v726
    %vm734 = vmor %vm732, %vm733
    %v735 = vsel %vm734, %v726, %v731
    %v736 = vmul.f32 %v724, %v735
    %v737 = vadd.f32 %v270, %v736
    %v738 = vadd.f32 %v713, %v737
    %v739 = vmul.f32 %v738, 0.5
    %v740 = vsel %vm149, %v739, %v738
    %v741 = vtanh.pop %v740
    %v742 = vmul.f32 %v741, 0.5
    %v743 = vadd.f32 %v742, 0.5
    %v744 = vsel %vm149, %v743, %v741
    %746 = vrot.lane.b32.xlu0 %v744, 96
    %v747 = vpop.permute.xlu0 %746
    %v749 = vmul.f32 %v604, %v747
    %v750 = vmul.f32 %v744, %v747
    %752 = vrot.lane.b32.xlu0 %v750, 32
    %v753 = vpop.permute.xlu0 %752
    %v755 = vadd.f32 %v749, %v753
    %v756 = vsel %vm156, %v755, 0.0
    %757 = vadd.xlane.f32.xlu0 %v756
    %v758 = vpop.xlane.xlu0 %757
    %v759 = vmul.f32 %v758, %v300
    %v760 = vmul.f32 %v755, %v755
    %v761 = vsel %vm156, %v760, 0.0
    %762 = vadd.xlane.f32.xlu0 %v761
    %v763 = vpop.xlane.xlu0 %762
    %v764 = vmul.f32 %v763, %v300
    %v765 = vmul.f32 %v759, %v759
    %v766 = vsub.f32 %v764, %v765
    %v767 = vsub.f32 %v755, %v759
    %v768 = vmul.f32 %v311, %v767
    %v769 = vadd.f32 %v766, 1e-05
    %v770 = vrsqrt.pop %v769
    %v771 = vmul.f32 %v770, %v769
    %v772 = vmul.f32 %v771, %v770
    %v773 = vmul.f32 0.5, %v772
    %v774 = vsub.f32 1.5, %v773
    %v775 = vmul.f32 %v770, %v774
    %vm776 = vweird.f32 %v769
    %vm777 = vweird.f32 %v770
    %vm778 = vmor %vm776, %vm777
    %v779 = vsel %vm778, %v770, %v775
    %v780 = vmul.f32 %v768, %v779
    %v781 = vadd.f32 %v327, %v780
    %v782 = vtanh.pop %v781
    %784 = vrot.lane.b32.xlu0 %v782, 64
    %v785 = vpop.permute.xlu0 %784
    %v787 = vmul.f32 %v744, %v785
    %789 = vrot.lane.b32.xlu0 %v787, 64
    %v790 = vpop.permute.xlu0 %789
    %s792 = scalar_lea.vmem [#allocation13], 24
    %793 = vst.msk [vmem:[%s792] sm:$0xff] %vm156, %v790
    %s794 = scalar_lea.vmem [#allocation4], 32
    %v795 = vld [vmem:[%s794] sm:$0xff]
    %v797 = vsel %vm156, %v795, 0
    %799 = vmatpush.msra.mxu0 0.0
    %800 = vmatpush.msra.mxu0 0.0
    %801 = vmatpush.msra.mxu0 0.0
    %802 = vmatpush.msra.mxu0 0.0
    %803 = vmatpush.msra.mxu0 0.0
    %804 = vmatpush.msra.mxu0 0.0
    %805 = vmatpush.msra.mxu0 0.0
    %806 = vmatpush.msra.mxu0 0.0
    %807 = vmatpush.msra.mxu0 0.0
    %808 = vmatpush.msra.mxu0 0.0
    %809 = vmatpush.msra.mxu0 0.0
    %810 = vmatpush.msra.mxu0 0.0
    %811 = vmatpush.msra.mxu0 %v134
    %812 = vmatpush.msra.mxu0 %v133
    %813 = vmatpush.msra.mxu0 %v132
    %814 = vmatpush.msra.mxu0 %v131
    %815 = vmatmul.f32.gmra.mxu0 %v797
    %v816 = vpop.f32.mrf.mxu0
    %v817 = vadd.f32 %v154, %v816
    %818 = vdwg.mxu0
    %v819 = vsel %vm156, %v790, 0
    %821 = vmatpush.msra.mxu0 0.0
    %822 = vmatpush.msra.mxu0 0.0
    %823 = vmatpush.msra.mxu0 0.0
    %824 = vmatpush.msra.mxu0 0.0
    %825 = vmatpush.msra.mxu0 0.0
    %826 = vmatpush.msra.mxu0 0.0
    %827 = vmatpush.msra.mxu0 0.0
    %828 = vmatpush.msra.mxu0 0.0
    %829 = vmatpush.msra.mxu0 0.0
    %830 = vmatpush.msra.mxu0 0.0
    %831 = vmatpush.msra.mxu0 0.0
    %832 = vmatpush.msra.mxu0 0.0
    %833 = vmatpush.msra.mxu0 %v138
    %834 = vmatpush.msra.mxu0 %v137
    %835 = vmatpush.msra.mxu0 %v136
    %836 = vmatpush.msra.mxu0 %v135
    %837 = vmatmul.f32.gmra.mxu0 %v819
    %v838 = vpop.f32.mrf.mxu0
    %v839 = vadd.f32 %v181, %v838
    %840 = vdwg.mxu0
    %841 = vadd.xlane.f32.xlu0 %v817
    %v842 = vpop.xlane.xlu0 %841
    %v843 = vmul.f32 %v842, %v214
    %v844 = vmul.f32 %v817, %v817
    %845 = vadd.xlane.f32.xlu0 %v844
    %v846 = vpop.xlane.xlu0 %845
    %v847 = vmul.f32 %v846, %v214
    %v848 = vmul.f32 %v843, %v843
    %v849 = vsub.f32 %v847, %v848
    %v850 = vsub.f32 %v817, %v843
    %v851 = vmul.f32 %v224, %v850
    %v852 = vadd.f32 %v849, 1e-05
    %v853 = vrsqrt.pop %v852
    %v854 = vmul.f32 %v853, %v852
    %v855 = vmul.f32 %v854, %v853
    %v856 = vmul.f32 0.5, %v855
    %v857 = vsub.f32 1.5, %v856
    %v858 = vmul.f32 %v853, %v857
    %vm859 = vweird.f32 %v852
    %vm860 = vweird.f32 %v853
    %vm861 = vmor %vm859, %vm860
    %v862 = vsel %vm861, %v853, %v858
    %v863 = vmul.f32 %v851, %v862
    %v864 = vadd.f32 %v240, %v863
    %865 = vadd.xlane.f32.xlu0 %v839
    %v866 = vpop.xlane.xlu0 %865
    %v867 = vmul.f32 %v866, %v214
    %v868 = vmul.f32 %v839, %v839
    %869 = vadd.xlane.f32.xlu0 %v868
    %v870 = vpop.xlane.xlu0 %869
    %v871 = vmul.f32 %v870, %v214
    %v872 = vmul.f32 %v867, %v867
    %v873 = vsub.f32 %v871, %v872
    %v874 = vsub.f32 %v839, %v867
    %v875 = vmul.f32 %v254, %v874
    %v876 = vadd.f32 %v873, 1e-05
    %v877 = vrsqrt.pop %v876
    %v878 = vmul.f32 %v877, %v876
    %v879 = vmul.f32 %v878, %v877
    %v880 = vmul.f32 0.5, %v879
    %v881 = vsub.f32 1.5, %v880
    %v882 = vmul.f32 %v877, %v881
    %vm883 = vweird.f32 %v876
    %vm884 = vweird.f32 %v877
    %vm885 = vmor %vm883, %vm884
    %v886 = vsel %vm885, %v877, %v882
    %v887 = vmul.f32 %v875, %v886
    %v888 = vadd.f32 %v270, %v887
    %v889 = vadd.f32 %v864, %v888
    %v890 = vmul.f32 %v889, 0.5
    %v891 = vsel %vm149, %v890, %v889
    %v892 = vtanh.pop %v891
    %v893 = vmul.f32 %v892, 0.5
    %v894 = vadd.f32 %v893, 0.5
    %v895 = vsel %vm149, %v894, %v892
    %897 = vrot.lane.b32.xlu0 %v895, 96
    %v898 = vpop.permute.xlu0 %897
    %v900 = vmul.f32 %v755, %v898
    %v901 = vmul.f32 %v895, %v898
    %903 = vrot.lane.b32.xlu0 %v901, 32
    %v904 = vpop.permute.xlu0 %903
    %v906 = vadd.f32 %v900, %v904
    %v907 = vsel %vm156, %v906, 0.0
    %908 = vadd.xlane.f32.xlu0 %v907
    %v909 = vpop.xlane.xlu0 %908
    %v910 = vmul.f32 %v909, %v300
    %v911 = vmul.f32 %v906, %v906
    %v912 = vsel %vm156, %v911, 0.0
    %913 = vadd.xlane.f32.xlu0 %v912
    %v914 = vpop.xlane.xlu0 %913
    %v915 = vmul.f32 %v914, %v300
    %v916 = vmul.f32 %v910, %v910
    %v917 = vsub.f32 %v915, %v916
    %v918 = vsub.f32 %v906, %v910
    %v919 = vmul.f32 %v311, %v918
    %v920 = vadd.f32 %v917, 1e-05
    %v921 = vrsqrt.pop %v920
    %v922 = vmul.f32 %v921, %v920
    %v923 = vmul.f32 %v922, %v921
    %v924 = vmul.f32 0.5, %v923
    %v925 = vsub.f32 1.5, %v924
    %v926 = vmul.f32 %v921, %v925
    %vm927 = vweird.f32 %v920
    %vm928 = vweird.f32 %v921
    %vm929 = vmor %vm927, %vm928
    %v930 = vsel %vm929, %v921, %v926
    %v931 = vmul.f32 %v919, %v930
    %v932 = vadd.f32 %v327, %v931
    %v933 = vtanh.pop %v932
    %935 = vrot.lane.b32.xlu0 %v933, 64
    %v936 = vpop.permute.xlu0 %935
    %v938 = vmul.f32 %v895, %v936
    %940 = vrot.lane.b32.xlu0 %v938, 64
    %v941 = vpop.permute.xlu0 %940
    %s943 = scalar_lea.vmem [#allocation13], 32
    %944 = vst.msk [vmem:[%s943] sm:$0xff] %vm156, %v941
    %s945 = scalar_lea.vmem [#allocation4], 40
    %v946 = vld [vmem:[%s945] sm:$0xff]
    %v948 = vsel %vm156, %v946, 0
    %950 = vmatpush.msra.mxu0 0.0
    %951 = vmatpush.msra.mxu0 0.0
    %952 = vmatpush.msra.mxu0 0.0
    %953 = vmatpush.msra.mxu0 0.0
    %954 = vmatpush.msra.mxu0 0.0
    %955 = vmatpush.msra.mxu0 0.0
    %956 = vmatpush.msra.mxu0 0.0
    %957 = vmatpush.msra.mxu0 0.0
    %958 = vmatpush.msra.mxu0 0.0
    %959 = vmatpush.msra.mxu0 0.0
    %960 = vmatpush.msra.mxu0 0.0
    %961 = vmatpush.msra.mxu0 0.0
    %962 = vmatpush.msra.mxu0 %v134
    %963 = vmatpush.msra.mxu0 %v133
    %964 = vmatpush.msra.mxu0 %v132
    %965 = vmatpush.msra.mxu0 %v131
    %966 = vmatmul.f32.gmra.mxu0 %v948
    %v967 = vpop.f32.mrf.mxu0
    %v968 = vadd.f32 %v154, %v967
    %969 = vdwg.mxu0
    %v970 = vsel %vm156, %v941, 0
    %972 = vmatpush.msra.mxu0 0.0
    %973 = vmatpush.msra.mxu0 0.0
    %974 = vmatpush.msra.mxu0 0.0
    %975 = vmatpush.msra.mxu0 0.0
    %976 = vmatpush.msra.mxu0 0.0
    %977 = vmatpush.msra.mxu0 0.0
    %978 = vmatpush.msra.mxu0 0.0
    %979 = vmatpush.msra.mxu0 0.0
    %980 = vmatpush.msra.mxu0 0.0
    %981 = vmatpush.msra.mxu0 0.0
    %982 = vmatpush.msra.mxu0 0.0
    %983 = vmatpush.msra.mxu0 0.0
    %984 = vmatpush.msra.mxu0 %v138
    %985 = vmatpush.msra.mxu0 %v137
    %986 = vmatpush.msra.mxu0 %v136
    %987 = vmatpush.msra.mxu0 %v135
    %988 = vmatmul.f32.gmra.mxu0 %v970
    %v989 = vpop.f32.mrf.mxu0
    %v990 = vadd.f32 %v181, %v989
    %991 = vdwg.mxu0
    %992 = vadd.xlane.f32.xlu0 %v968
    %v993 = vpop.xlane.xlu0 %992
    %v994 = vmul.f32 %v993, %v214
    %v995 = vmul.f32 %v968, %v968
    %996 = vadd.xlane.f32.xlu0 %v995
    %v997 = vpop.xlane.xlu0 %996
    %v998 = vmul.f32 %v997, %v214
    %v999 = vmul.f32 %v994, %v994
    %v1000 = vsub.f32 %v998, %v999
    %v1001 = vsub.f32 %v968, %v994
    %v1002 = vmul.f32 %v224, %v1001
    %v1003 = vadd.f32 %v1000, 1e-05
    %v1004 = vrsqrt.pop %v1003
    %v1005 = vmul.f32 %v1004, %v1003
    %v1006 = vmul.f32 %v1005, %v1004
    %v1007 = vmul.f32 0.5, %v1006
    %v1008 = vsub.f32 1.5, %v1007
    %v1009 = vmul.f32 %v1004, %v1008
    %vm1010 = vweird.f32 %v1003
    %vm1011 = vweird.f32 %v1004
    %vm1012 = vmor %vm1010, %vm1011
    %v1013 = vsel %vm1012, %v1004, %v1009
    %v1014 = vmul.f32 %v1002, %v1013
    %v1015 = vadd.f32 %v240, %v1014
    %1016 = vadd.xlane.f32.xlu0 %v990
    %v1017 = vpop.xlane.xlu0 %1016
    %v1018 = vmul.f32 %v1017, %v214
    %v1019 = vmul.f32 %v990, %v990
    %1020 = vadd.xlane.f32.xlu0 %v1019
    %v1021 = vpop.xlane.xlu0 %1020
    %v1022 = vmul.f32 %v1021, %v214
    %v1023 = vmul.f32 %v1018, %v1018
    %v1024 = vsub.f32 %v1022, %v1023
    %v1025 = vsub.f32 %v990, %v1018
    %v1026 = vmul.f32 %v254, %v1025
    %v1027 = vadd.f32 %v1024, 1e-05
    %v1028 = vrsqrt.pop %v1027
    %v1029 = vmul.f32 %v1028, %v1027
    %v1030 = vmul.f32 %v1029, %v1028
    %v1031 = vmul.f32 0.5, %v1030
    %v1032 = vsub.f32 1.5, %v1031
    %v1033 = vmul.f32 %v1028, %v1032
    %vm1034 = vweird.f32 %v1027
    %vm1035 = vweird.f32 %v1028
    %vm1036 = vmor %vm1034, %vm1035
    %v1037 = vsel %vm1036, %v1028, %v1033
    %v1038 = vmul.f32 %v1026, %v1037
    %v1039 = vadd.f32 %v270, %v1038
    %v1040 = vadd.f32 %v1015, %v1039
    %v1041 = vmul.f32 %v1040, 0.5
    %v1042 = vsel %vm149, %v1041, %v1040
    %v1043 = vtanh.pop %v1042
    %v1044 = vmul.f32 %v1043, 0.5
    %v1045 = vadd.f32 %v1044, 0.5
    %v1046 = vsel %vm149, %v1045, %v1043
    %1048 = vrot.lane.b32.xlu0 %v1046, 96
    %v1049 = vpop.permute.xlu0 %1048
    %v1051 = vmul.f32 %v906, %v1049
    %v1052 = vmul.f32 %v1046, %v1049
    %1054 = vrot.lane.b32.xlu0 %v1052, 32
    %v1055 = vpop.permute.xlu0 %1054
    %v1057 = vadd.f32 %v1051, %v1055
    %v1058 = vsel %vm156, %v1057, 0.0
    %1059 = vadd.xlane.f32.xlu0 %v1058
    %v1060 = vpop.xlane.xlu0 %1059
    %v1061 = vmul.f32 %v1060, %v300
    %v1062 = vmul.f32 %v1057, %v1057
    %v1063 = vsel %vm156, %v1062, 0.0
    %1064 = vadd.xlane.f32.xlu0 %v1063
    %v1065 = vpop.xlane.xlu0 %1064
    %v1066 = vmul.f32 %v1065, %v300
    %v1067 = vmul.f32 %v1061, %v1061
    %v1068 = vsub.f32 %v1066, %v1067
    %v1069 = vsub.f32 %v1057, %v1061
    %v1070 = vmul.f32 %v311, %v1069
    %v1071 = vadd.f32 %v1068, 1e-05
    %v1072 = vrsqrt.pop %v1071
    %v1073 = vmul.f32 %v1072, %v1071
    %v1074 = vmul.f32 %v1073, %v1072
    %v1075 = vmul.f32 0.5, %v1074
    %v1076 = vsub.f32 1.5, %v1075
    %v1077 = vmul.f32 %v1072, %v1076
    %vm1078 = vweird.f32 %v1071
    %vm1079 = vweird.f32 %v1072
    %vm1080 = vmor %vm1078, %vm1079
    %v1081 = vsel %vm1080, %v1072, %v1077
    %v1082 = vmul.f32 %v1070, %v1081
    %v1083 = vadd.f32 %v327, %v1082
    %v1084 = vtanh.pop %v1083
    %1086 = vrot.lane.b32.xlu0 %v1084, 64
    %v1087 = vpop.permute.xlu0 %1086
    %v1089 = vmul.f32 %v1046, %v1087
    %1091 = vrot.lane.b32.xlu0 %v1089, 64
    %v1092 = vpop.permute.xlu0 %1091
    %s1094 = scalar_lea.vmem [#allocation13], 40
    %1095 = vst.msk [vmem:[%s1094] sm:$0xff] %vm156, %v1092
    %1096 = vst.msk [vmem:[#allocation2] sm:$0xff] %vm156, %v1092
    %1097 = vst.msk [vmem:[#allocation3] sm:$0xff] %vm156, %v1057
    %1098 = vst.msk [vmem:[#allocation14] sm:$0xff] %vm156, %v1057
    // Predicated region
    $region78: #{tpu_custom_call.1} parent=1 // pred_check
      _
    $region79: #{tpu_custom_call.1} parent=1 // pred_check_branch
      %1100 = sbr.rel (0) target = $region81
    $region80: #{tpu_custom_call.1} parent=1 // pred_region
      %1102 = vsyncadd [#allocation6], 0
      %s1103 = sshll.u32 [#allocation13], 4
      %s1104 = int_to_ptr.vmem [resolvable:$true] %s1103
      %s1105 = sshll.u32 %s13, 4
      %s1106 = int_to_ptr.hbm [resolvable:$true] %s1105
      %1111 = dma.vmem_to_hbm [thread:$0]  %s1104, 768, %s1106, [#allocation6], 128, 128, 8
    $region81: #{tpu_custom_call.1} parent=1 // pred_fallthru
      _
    // Predicated region
    $region82: #{tpu_custom_call.1} parent=1 // pred_check
      _
    $region83: #{tpu_custom_call.1} parent=1 // pred_check_branch
      %1113 = sbr.rel (0) target = $region85
    $region84: #{tpu_custom_call.1} parent=1 // pred_region
      %1115 = vsyncadd [#allocation15], 0
      %s1117 = sshll.u32 [#allocation14], 4
      %s1118 = int_to_ptr.vmem [resolvable:$true] %s1117
      %s1119 = sshll.u32 %s14, 4
      %s1120 = int_to_ptr.hbm [resolvable:$true] %s1119
      %1122 = dma.vmem_to_hbm [thread:$0]  %s1118, 128, %s1120, [#allocation15]
    $region85: #{tpu_custom_call.1} parent=1 // pred_fallthru
      _
    // Predicated region
    $region86: #{tpu_custom_call.1} parent=1 // pred_check
      _
    $region87: #{tpu_custom_call.1} parent=1 // pred_check_branch
      %1124 = sbr.rel (0) target = $region89
    $region88: #{tpu_custom_call.1} parent=1 // pred_region
      %1126 = dma.done [#allocation6], 768
    $region89: #{tpu_custom_call.1} parent=1 // pred_fallthru
      _
    // Predicated region
    $region90: #{tpu_custom_call.1} parent=1 // pred_check
      _
    $region91: #{tpu_custom_call.1} parent=1 // pred_check_branch
      %1128 = sbr.rel (0) target = $region93
    $region92: #{tpu_custom_call.1} parent=1 // pred_region
      %1130 = dma.done [#allocation15], 128
    $region93: #{tpu_custom_call.1} parent=1 // pred_fallthru
      _
    %1131 = vsyncpa [#allocation5], 1
    %1132 = vsyncpa [#allocation8], 1
    %1133 = vsyncpa [#allocation11], 1
    %1134 = vsyncpa [#allocation6], 1
    %1135 = vsyncpa [#allocation15], 1

</llo_original>
